<compile_context>
chip_gen: v5e
topology: v5e:2x2
jax: 0.10.0
libtpu: 0.0.40
codegen_flags: <defaults>
</compile_context>

<pallas_src>
import jax
import jax.numpy as jnp
from jax.experimental import pallas as pl
from jax.experimental.pallas import tpu as pltpu


# ----------------------------------------------------------------------------
# Pallas kernels
# ----------------------------------------------------------------------------
def _layernorm(x, g, b, eps=1e-5):
    mu = jnp.mean(x, axis=-1, keepdims=True)
    var = jnp.mean((x - mu) ** 2, axis=-1, keepdims=True)
    return (x - mu) * jax.lax.rsqrt(var + eps) * g + b


def encoder_block_kernel(x_ref, wqkv_ref, bqkv_ref, wo_ref,
                         w1_ref, b1_ref, w2_ref, hpar_ref,
                         out_ref, h_sc, acc_sc):
    """One transformer encoder block, F-tiled over the FFN inner dimension.

    grid = (B, F // TF). Per batch element: attention + first LayerNorm run
    once (kf == 0) into VMEM scratch; every kf accumulates one TF-wide FFN
    chunk into a f32 accumulator; the last kf applies the second LayerNorm
    and writes the output tile.

    hpar_ref rows: [bo, b2, ln1_g, ln1_b, ln2_g, ln2_b], each (1, H) f32.
    """
    kf = pl.program_id(1)

    @pl.when(kf == 0)
    def _():
        x = x_ref[0]                                               # (S, H) bf16
        H = x.shape[-1]
        # Fused QKV projection: one MXU pass with N = 3H.
        qkv = jnp.dot(x, wqkv_ref[...],
                      preferred_element_type=jnp.float32) + bqkv_ref[...]
        q = qkv[:, :H].astype(jnp.bfloat16)
        k = qkv[:, H:2 * H].astype(jnp.bfloat16)
        v = qkv[:, 2 * H:].astype(jnp.bfloat16)
        # q @ k^T as a dot_general contraction (1/1): no XLU transpose.
        s = jax.lax.dot_general(q, k, (((1,), (1,)), ((), ())),
                                preferred_element_type=jnp.float32)
        s = s * (H ** -0.5)
        s = s - jnp.max(s, axis=-1, keepdims=True)                 # stable softmax
        p = jnp.exp(s)
        p = p * pl.reciprocal(jnp.sum(p, axis=-1, keepdims=True), approx=True)
        ctx = jnp.dot(p.astype(jnp.bfloat16), v,
                      preferred_element_type=jnp.float32)          # (S, H)
        attn = jnp.dot(ctx.astype(jnp.bfloat16), wo_ref[...],
                       preferred_element_type=jnp.float32) + hpar_ref[0:1]
        h_sc[...] = _layernorm(x.astype(jnp.float32) + attn,
                               hpar_ref[2:3], hpar_ref[3:4])
        acc_sc[...] = jnp.zeros_like(acc_sc)

    # FFN chunk: (S,H) @ (H,TF) -> gelu -> (S,TF) @ (TF,H), accumulated in f32.
    h_bf = h_sc[...].astype(jnp.bfloat16)
    f = jnp.dot(h_bf, w1_ref[...], preferred_element_type=jnp.float32) + b1_ref[...]
    f = jax.nn.gelu(f, approximate=True)
    acc_sc[...] += jnp.dot(f.astype(jnp.bfloat16), w2_ref[...],
                           preferred_element_type=jnp.float32)

    @pl.when(kf == pl.num_programs(1) - 1)
    def _():
        out = _layernorm(h_sc[...] + acc_sc[...] + hpar_ref[1:2],
                         hpar_ref[4:5], hpar_ref[5:6])
        out_ref[0] = out.astype(out_ref.dtype)


def cls_head_kernel(hcls_ref, w_ref, b_ref, out_ref):
    """fc(h[:, 0, :]) -> F.normalize, on a (TB, H) batch tile."""
    y = jnp.dot(hcls_ref[...], w_ref[...],
                preferred_element_type=jnp.float32) + b_ref[...]
    # F.normalize: clamp(norm, 1e-12) == rsqrt(clamp(sum_sq, 1e-24)).
    inv = jax.lax.rsqrt(jnp.maximum(jnp.sum(y * y, axis=-1, keepdims=True), 1e-24))
    out_ref[...] = (y * inv).astype(out_ref.dtype)


def mean_head_kernel(h_ref, mask_ref, w_ref, b_ref, out_ref):
    """mask-mean pooling -> fc -> F.normalize, on a (TB, S, H) batch tile."""
    h = h_ref[...].astype(jnp.float32)                             # (TB, S, H)
    # torch casts mask to float16; we keep f32 (same values for a 0/1 mask).
    m = mask_ref[...][:, :, None]                                  # (TB, S, 1)
    num = jnp.sum(h * m, axis=1)                                   # (TB, H)
    den = jnp.maximum(jnp.sum(m, axis=1), 1e-9)                    # clamp(min=1e-9)
    pooled = num * pl.reciprocal(den, approx=True)
    y = jnp.dot(pooled.astype(jnp.bfloat16), w_ref[...],
                preferred_element_type=jnp.float32) + b_ref[...]
    inv = jax.lax.rsqrt(jnp.maximum(jnp.sum(y * y, axis=-1, keepdims=True), 1e-24))
    out_ref[...] = (y * inv).astype(out_ref.dtype)


# ----------------------------------------------------------------------------
# Wrappers (pallas_call plumbing)
# ----------------------------------------------------------------------------
def encoder_block(x_bf16, params, *, tf=128):
    """x: (B, S, H) bf16 -> (B, S, H) bf16."""
    B, S, H = x_bf16.shape
    F = params["w1"].shape[1]
    tf = min(tf, F)
    assert F % tf == 0, "FFN dim must be divisible by the F tile"
    kf = F // tf

    return pl.pallas_call(
        encoder_block_kernel,
        out_shape=jax.ShapeDtypeStruct((B, S, H), jnp.bfloat16),
        grid=(B, kf),
        in_specs=[
            pl.BlockSpec((1, S, H), lambda b, k: (b, 0, 0)),      # x
            pl.BlockSpec((H, 3 * H), lambda b, k: (0, 0)),        # wqkv
            pl.BlockSpec((1, 3 * H), lambda b, k: (0, 0)),        # bqkv
            pl.BlockSpec((H, H), lambda b, k: (0, 0)),            # wo
            pl.BlockSpec((H, tf), lambda b, k: (0, k)),           # w1 chunk
            pl.BlockSpec((1, tf), lambda b, k: (0, k)),           # b1 chunk
            pl.BlockSpec((tf, H), lambda b, k: (k, 0)),           # w2 chunk
            pl.BlockSpec((6, H), lambda b, k: (0, 0)),            # packed biases/LN
        ],
        out_specs=pl.BlockSpec((1, S, H), lambda b, k: (b, 0, 0)),
        scratch_shapes=[pltpu.VMEM((S, H), jnp.float32),          # h after LN1
                        pltpu.VMEM((S, H), jnp.float32)],         # FFN accumulator
        compiler_params=pltpu.CompilerParams(
            dimension_semantics=("parallel", "arbitrary"),        # batch -> megacore
            vmem_limit_bytes=48 * 1024 * 1024),                   # < v7x 64 MiB phys
    )(x_bf16, params["wqkv"], params["bqkv"], params["wo"],
      params["w1"], params["b1"], params["w2"], params["hpar"])


def _head_batch_tile(B):
    return 8 if B % 8 == 0 else B


def clsep_head_cls(h_cls, fc_w_t, fc_b):
    """h_cls: (B, H) bf16 (row 0 only) -> (B, H) f32 L2-normalized."""
    B, H = h_cls.shape
    tb = _head_batch_tile(B)
    return pl.pallas_call(
        cls_head_kernel,
        out_shape=jax.ShapeDtypeStruct((B, H), jnp.float32),
        grid=(B // tb,),
        in_specs=[
            pl.BlockSpec((tb, H), lambda i: (i, 0)),
            pl.BlockSpec((H, H), lambda i: (0, 0)),
            pl.BlockSpec((1, H), lambda i: (0, 0)),
        ],
        out_specs=pl.BlockSpec((tb, H), lambda i: (i, 0)),
        compiler_params=pltpu.CompilerParams(
            dimension_semantics=("parallel",),
            vmem_limit_bytes=32 * 1024 * 1024),
    )(h_cls, fc_w_t, fc_b)


def clsep_head_mean(h, mask, fc_w_t, fc_b):
    """h: (B, S, H) bf16, mask: (B, S) f32 -> (B, H) f32 L2-normalized."""
    B, S, H = h.shape
    tb = _head_batch_tile(B)
    return pl.pallas_call(
        mean_head_kernel,
        out_shape=jax.ShapeDtypeStruct((B, H), jnp.float32),
        grid=(B // tb,),
        in_specs=[
            pl.BlockSpec((tb, S, H), lambda i: (i, 0, 0)),
            pl.BlockSpec((tb, S), lambda i: (i, 0)),
            pl.BlockSpec((H, H), lambda i: (0, 0)),
            pl.BlockSpec((1, H), lambda i: (0, 0)),
        ],
        out_specs=pl.BlockSpec((tb, H), lambda i: (i, 0)),
        compiler_params=pltpu.CompilerParams(
            dimension_semantics=("parallel",),
            vmem_limit_bytes=32 * 1024 * 1024),
    )(h, mask, fc_w_t, fc_b)


def clsep_forward(x_ids, x_mask, params, pooling="cls"):
    """Full CLSepModel.forward with a synthetic 1-layer encoder as `self.bert`."""
    # Glue: embedding lookup (stands in for bert token + position embeddings).
    tok = params["tok_emb"][x_ids]                                 # (B, S, H)
    pos = params["pos_emb"][None, : x_ids.shape[1], :]             # (1, S, H)
    x = (tok + pos).astype(jnp.bfloat16)

    h = encoder_block(x, params)                                   # bert(x1)[0]
    if pooling == "mean":
        return clsep_head_mean(h, x_mask.astype(jnp.float32),
                               params["fc_w_t"], params["fc_b"])
    # 'cls': only the S=0 row is needed — slice it before the pallas_call so
    # the head kernel never streams the full (B, S, H) hidden states.
    return clsep_head_cls(h[:, 0, :], params["fc_w_t"], params["fc_b"])


# ----------------------------------------------------------------------------
# Deterministic parameter init + plain-JAX references + demo
# ----------------------------------------------------------------------------
def init_params(key, vocab, S, H, F):
    ks = jax.random.split(key, 12)
    nrm = lambda k, shape: (0.02 * jax.random.normal(k, shape)).astype(jnp.float32)
    return {
        # Embedding tables (applied as plain-JAX glue).
        "tok_emb": nrm(ks[0], (vocab, H)),
        "pos_emb": nrm(ks[1], (S, H)),
        # Fused QKV projection, stored (in, out); weights in bf16.
        "wqkv": nrm(ks[2], (H, 3 * H)).astype(jnp.bfloat16),
        "bqkv": nrm(ks[3], (1, 3 * H)),
        "wo": nrm(ks[4], (H, H)).astype(jnp.bfloat16),
        "w1": nrm(ks[5], (H, F)).astype(jnp.bfloat16),
        "b1": nrm(ks[6], (1, F)),
        "w2": nrm(ks[7], (F, H)).astype(jnp.bfloat16),
        # Packed (1,H) params: rows = [bo, b2, ln1_g, ln1_b, ln2_g, ln2_b].
        "hpar": jnp.concatenate([
            nrm(ks[8], (1, H)),                 # bo
            nrm(ks[9], (1, H)),                 # b2
            jnp.ones((1, H), jnp.float32),      # ln1_g
            jnp.zeros((1, H), jnp.float32),     # ln1_b
            jnp.ones((1, H), jnp.float32),      # ln2_g
            jnp.zeros((1, H), jnp.float32),     # ln2_b
        ], axis=0),
        # self.fc = nn.Linear(H, H); stored transposed (in, out), bf16 weight.
        "fc_w_t": nrm(ks[10], (H, H)).astype(jnp.bfloat16),
        "fc_b": nrm(ks[11], (1, H)),
    }


def _encoder_reference(x, p):
    """Plain-JAX reference of the synthetic encoder (same bf16 casts)."""
    hpar = p["hpar"]
    bo, b2 = hpar[0], hpar[1]
    g1, be1, g2, be2 = hpar[2], hpar[3], hpar[4], hpar[5]
    H = x.shape[-1]
    qkv = jnp.dot(x, p["wqkv"], preferred_element_type=jnp.float32) + p["bqkv"]
    q, k, v = qkv[..., :H], qkv[..., H:2 * H], qkv[..., 2 * H:]
    s = jnp.einsum("bqh,bkh->bqk", q.astype(jnp.bfloat16), k.astype(jnp.bfloat16),
                   preferred_element_type=jnp.float32) * (H ** -0.5)
    a = jax.nn.softmax(s, axis=-1)
    ctx = jnp.einsum("bqk,bkh->bqh", a.astype(jnp.bfloat16), v.astype(jnp.bfloat16),
                     preferred_element_type=jnp.float32)
    attn = jnp.dot(ctx.astype(jnp.bfloat16), p["wo"],
                   preferred_element_type=jnp.float32) + bo
    hmid = _layernorm(x.astype(jnp.float32) + attn, g1, be1)
    f = jnp.dot(hmid.astype(jnp.bfloat16), p["w1"],
                preferred_element_type=jnp.float32) + p["b1"]
    f = jax.nn.gelu(f, approximate=True)
    ffn = jnp.dot(f.astype(jnp.bfloat16), p["w2"],
                  preferred_element_type=jnp.float32) + b2
    return _layernorm(hmid + ffn, g2, be2).astype(jnp.bfloat16)


def _head_reference(h, mask, fc_w_t, fc_b, pooling):
    """Plain-JAX reference for the CLSepModel head (same bf16 fc matmul)."""
    if pooling == "mean":
        m = mask.astype(jnp.float32)[:, :, None]
        pooled = (jnp.sum(h.astype(jnp.float32) * m, axis=1)
                  / jnp.maximum(jnp.sum(m, axis=1), 1e-9))
    else:
        pooled = h[:, 0, :].astype(jnp.float32)
    y = jnp.dot(pooled.astype(jnp.bfloat16), fc_w_t,
                preferred_element_type=jnp.float32) + fc_b
    return y / jnp.maximum(jnp.linalg.norm(y, axis=-1, keepdims=True), 1e-12)


if __name__ == "__main__":
    # Small but lane-dense demo shapes (H, F multiples of 128).
    B, S, H, F, VOCAB = 2, 8, 128, 256, 64

    key = jax.random.PRNGKey(0)
    k_ids, k_params = jax.random.split(key)
    params = init_params(k_params, VOCAB, S, H, F)

    x_ids = jax.random.randint(k_ids, (B, S), 0, VOCAB, dtype=jnp.int32)
    lengths = jnp.array([S, 5], dtype=jnp.int32)
    x_mask = (jnp.arange(S)[None, :] < lengths[:, None]).astype(jnp.int32)

    # Default pooling='cls' (as in the module); also exercise 'mean'.
    emb_cls = clsep_forward(x_ids, x_mask, params, pooling="cls")
    emb_mean = clsep_forward(x_ids, x_mask, params, pooling="mean")
    jax.block_until_ready((emb_cls, emb_mean))

    # --- correctness checks against plain-JAX references --------------------
    x = (params["tok_emb"][x_ids] + params["pos_emb"][None, :S, :]).astype(jnp.bfloat16)
    h_pallas = encoder_block(x, params)
    h_ref = _encoder_reference(x, params)
    assert jnp.allclose(h_pallas.astype(jnp.float32), h_ref.astype(jnp.float32),
                        atol=3e-2), "encoder mismatch"

    ref_cls = _head_reference(h_pallas, x_mask, params["fc_w_t"], params["fc_b"], "cls")
    ref_mean = _head_reference(h_pallas, x_mask, params["fc_w_t"], params["fc_b"], "mean")
    assert jnp.allclose(emb_cls, ref_cls, atol=5e-3), "cls head mismatch"
    assert jnp.allclose(emb_mean, ref_mean, atol=5e-3), "mean head mismatch"
    assert emb_cls.shape == (B, H) and emb_mean.shape == (B, H)

    print("KERNEL_OK")
</pallas_src>

<mosaic_0001>
module attributes {stable_mosaic.version = 11 : i64} {
  func.func @encoder_block_kernel(%arg0: i32, %arg1: i32, %arg2: memref<1x8x128xbf16, #tpu.memory_space<vmem>>, %arg3: memref<128x384xbf16, #tpu.memory_space<vmem>>, %arg4: memref<1x384xf32, #tpu.memory_space<vmem>>, %arg5: memref<128x128xbf16, #tpu.memory_space<vmem>>, %arg6: memref<128x128xbf16, #tpu.memory_space<vmem>>, %arg7: memref<1x128xf32, #tpu.memory_space<vmem>>, %arg8: memref<128x128xbf16, #tpu.memory_space<vmem>>, %arg9: memref<6x128xf32, #tpu.memory_space<vmem>>, %arg10: memref<1x8x128xbf16, #tpu.memory_space<vmem>>, %arg11: memref<8x128xf32, #tpu.memory_space<vmem>>, %arg12: memref<8x128xf32, #tpu.memory_space<vmem>>) attributes {dimension_semantics = [#tpu.dimension_semantics<parallel>, #tpu.dimension_semantics<arbitrary>], iteration_bounds = array<i64: 2, 2>, scalar_prefetch = 0 : i64, scratch_operands = 2 : i64, tpu.core_type = #tpu.core_type<tc>, window_params = [{transform_indices = @transform_0, window_bounds = array<i64: 1, 8, 128>}, {pipeline_mode = #tpu.pipeline_mode<synchronous>, transform_indices = @transform_1, window_bounds = array<i64: 128, 384>}, {pipeline_mode = #tpu.pipeline_mode<synchronous>, transform_indices = @transform_2, window_bounds = array<i64: 1, 384>}, {pipeline_mode = #tpu.pipeline_mode<synchronous>, transform_indices = @transform_3, window_bounds = array<i64: 128, 128>}, {transform_indices = @transform_4, window_bounds = array<i64: 128, 128>}, {transform_indices = @transform_5, window_bounds = array<i64: 1, 128>}, {transform_indices = @transform_6, window_bounds = array<i64: 128, 128>}, {pipeline_mode = #tpu.pipeline_mode<synchronous>, transform_indices = @transform_7, window_bounds = array<i64: 6, 128>}, {transform_indices = @transform_8, window_bounds = array<i64: 1, 8, 128>}]} {
    %c0_i32 = arith.constant 0 : i32
    %0 = arith.cmpi eq, %arg1, %c0_i32 : i32
    %1 = arith.extui %0 : i1 to i32
    %c0_i32_0 = arith.constant 0 : i32
    %2 = arith.cmpi ne, %1, %c0_i32_0 : i32
    scf.if %2 {
      %c0_18 = arith.constant 0 : index
      %c0_19 = arith.constant 0 : index
      %c0_20 = arith.constant 0 : index
      %32 = vector.load %arg2[%c0_18, %c0_19, %c0_20] : memref<1x8x128xbf16, #tpu.memory_space<vmem>>, vector<1x8x128xbf16>
      %33 = vector.shape_cast %32 : vector<1x8x128xbf16> to vector<8x128xbf16>
      %c0_21 = arith.constant 0 : index
      %c0_22 = arith.constant 0 : index
      %34 = vector.load %arg3[%c0_21, %c0_22] : memref<128x384xbf16, #tpu.memory_space<vmem>>, vector<128x384xbf16>
      %cst_23 = arith.constant dense<0.000000e+00> : vector<8x384xf32>
      %35 = tpu.matmul %33, %34, %cst_23 {dimension_numbers = #tpu.dot_dimension_numbers<[1], [0], [0], [1], [0, 0, 1, 1], [], []>} : vector<8x128xbf16>, vector<128x384xbf16>, vector<8x384xf32> -> vector<8x384xf32>
      %c0_24 = arith.constant 0 : index
      %c0_25 = arith.constant 0 : index
      %36 = vector.load %arg4[%c0_24, %c0_25] : memref<1x384xf32, #tpu.memory_space<vmem>>, vector<1x384xf32>
      %37 = vector.broadcast %36 : vector<1x384xf32> to vector<8x384xf32>
      %38 = arith.addf %35, %37 : vector<8x384xf32>
      %39 = vector.extract_strided_slice %38 {offsets = [0, 0], sizes = [8, 128], strides = [1, 1]} : vector<8x384xf32> to vector<8x128xf32>
      %40 = arith.truncf %39 : vector<8x128xf32> to vector<8x128xbf16>
      %41 = vector.extract_strided_slice %38 {offsets = [0, 128], sizes = [8, 128], strides = [1, 1]} : vector<8x384xf32> to vector<8x128xf32>
      %42 = arith.truncf %41 : vector<8x128xf32> to vector<8x128xbf16>
      %43 = vector.extract_strided_slice %38 {offsets = [0, 256], sizes = [8, 128], strides = [1, 1]} : vector<8x384xf32> to vector<8x128xf32>
      %44 = arith.truncf %43 : vector<8x128xf32> to vector<8x128xbf16>
      %cst_26 = arith.constant dense<0.000000e+00> : vector<8x8xf32>
      %45 = tpu.matmul %40, %42, %cst_26 {dimension_numbers = #tpu.dot_dimension_numbers<[1], [1], [0], [0], [0, 0, 1, 0], [], []>} : vector<8x128xbf16>, vector<8x128xbf16>, vector<8x8xf32> -> vector<8x8xf32>
      %cst_27 = arith.constant 0.0883883461 : f32
      %46 = vector.broadcast %cst_27 : f32 to vector<8x8xf32>
      %47 = arith.mulf %45, %46 : vector<8x8xf32>
      %cst_28 = arith.constant dense<0xFF800000> : vector<8xf32>
      %48 = vector.multi_reduction <maximumf>, %47, %cst_28 [1] : vector<8x8xf32> to vector<8xf32>
      %49 = vector.shape_cast %48 : vector<8xf32> to vector<8x1xf32>
      %50 = vector.broadcast %49 : vector<8x1xf32> to vector<8x8xf32>
      %51 = arith.subf %47, %50 : vector<8x8xf32>
      %52 = math.exp %51 : vector<8x8xf32>
      %cst_29 = arith.constant dense<0.000000e+00> : vector<8xf32>
      %53 = vector.multi_reduction <add>, %52, %cst_29 [1] : vector<8x8xf32> to vector<8xf32>
      %54 = vector.shape_cast %53 : vector<8xf32> to vector<8x1xf32>
      %55 = tpu.reciprocal %54 {approx = true} : vector<8x1xf32> -> vector<8x1xf32>
      %56 = vector.broadcast %55 : vector<8x1xf32> to vector<8x8xf32>
      %57 = arith.mulf %52, %56 : vector<8x8xf32>
      %58 = arith.truncf %57 : vector<8x8xf32> to vector<8x8xbf16>
      %cst_30 = arith.constant dense<0.000000e+00> : vector<8x128xf32>
      %59 = tpu.matmul %58, %44, %cst_30 {dimension_numbers = #tpu.dot_dimension_numbers<[1], [0], [0], [1], [0, 0, 1, 1], [], []>} : vector<8x8xbf16>, vector<8x128xbf16>, vector<8x128xf32> -> vector<8x128xf32>
      %60 = arith.truncf %59 : vector<8x128xf32> to vector<8x128xbf16>
      %c0_31 = arith.constant 0 : index
      %c0_32 = arith.constant 0 : index
      %61 = vector.load %arg5[%c0_31, %c0_32] : memref<128x128xbf16, #tpu.memory_space<vmem>>, vector<128x128xbf16>
      %cst_33 = arith.constant dense<0.000000e+00> : vector<8x128xf32>
      %62 = tpu.matmul %60, %61, %cst_33 {dimension_numbers = #tpu.dot_dimension_numbers<[1], [0], [0], [1], [0, 0, 1, 1], [], []>} : vector<8x128xbf16>, vector<128x128xbf16>, vector<8x128xf32> -> vector<8x128xf32>
      %c0_34 = arith.constant 0 : index
      %c0_35 = arith.constant 0 : index
      %63 = vector.load %arg9[%c0_34, %c0_35] : memref<6x128xf32, #tpu.memory_space<vmem>>, vector<1x128xf32>
      %64 = vector.broadcast %63 : vector<1x128xf32> to vector<8x128xf32>
      %65 = arith.addf %62, %64 : vector<8x128xf32>
      %66 = arith.extf %33 : vector<8x128xbf16> to vector<8x128xf32>
      %67 = arith.addf %66, %65 : vector<8x128xf32>
      %c2 = arith.constant 2 : index
      %c0_36 = arith.constant 0 : index
      %68 = vector.load %arg9[%c2, %c0_36] : memref<6x128xf32, #tpu.memory_space<vmem>>, vector<1x128xf32>
      %c3 = arith.constant 3 : index
      %c0_37 = arith.constant 0 : index
      %69 = vector.load %arg9[%c3, %c0_37] : memref<6x128xf32, #tpu.memory_space<vmem>>, vector<1x128xf32>
      %cst_38 = arith.constant dense<0.000000e+00> : vector<8xf32>
      %70 = vector.multi_reduction <add>, %67, %cst_38 [1] : vector<8x128xf32> to vector<8xf32>
      %71 = vector.shape_cast %70 : vector<8xf32> to vector<8x1xf32>
      %cst_39 = arith.constant 1.280000e+02 : f32
      %72 = vector.broadcast %cst_39 : f32 to vector<8x1xf32>
      %73 = arith.divf %71, %72 : vector<8x1xf32>
      %74 = vector.broadcast %73 : vector<8x1xf32> to vector<8x128xf32>
      %75 = arith.subf %67, %74 : vector<8x128xf32>
      %76 = arith.mulf %75, %75 : vector<8x128xf32>
      %cst_40 = arith.constant dense<0.000000e+00> : vector<8xf32>
      %77 = vector.multi_reduction <add>, %76, %cst_40 [1] : vector<8x128xf32> to vector<8xf32>
      %78 = vector.shape_cast %77 : vector<8xf32> to vector<8x1xf32>
      %cst_41 = arith.constant 1.280000e+02 : f32
      %79 = vector.broadcast %cst_41 : f32 to vector<8x1xf32>
      %80 = arith.divf %78, %79 : vector<8x1xf32>
      %81 = vector.broadcast %73 : vector<8x1xf32> to vector<8x128xf32>
      %82 = arith.subf %67, %81 : vector<8x128xf32>
      %cst_42 = arith.constant 9.99999974E-6 : f32
      %83 = vector.broadcast %cst_42 : f32 to vector<8x1xf32>
      %84 = arith.addf %80, %83 : vector<8x1xf32>
      %85 = math.rsqrt %84 : vector<8x1xf32>
      %86 = vector.broadcast %85 : vector<8x1xf32> to vector<8x128xf32>
      %87 = arith.mulf %82, %86 : vector<8x128xf32>
      %88 = vector.broadcast %68 : vector<1x128xf32> to vector<8x128xf32>
      %89 = arith.mulf %87, %88 : vector<8x128xf32>
      %90 = vector.broadcast %69 : vector<1x128xf32> to vector<8x128xf32>
      %91 = arith.addf %89, %90 : vector<8x128xf32>
      %c0_43 = arith.constant 0 : index
      %c0_44 = arith.constant 0 : index
      %92 = vector.load %arg11[%c0_43, %c0_44] : memref<8x128xf32, #tpu.memory_space<vmem>>, vector<8x128xf32>
      tpu.vector_store %arg11[%c0_43, %c0_44], %91 {strides = array<i32>} : memref<8x128xf32, #tpu.memory_space<vmem>>, vector<8x128xf32>,
      %cst_45 = arith.constant 0.000000e+00 : f32
      %93 = vector.broadcast %cst_45 : f32 to vector<8x128xf32>
      %c0_46 = arith.constant 0 : index
      %c0_47 = arith.constant 0 : index
      %94 = vector.load %arg12[%c0_46, %c0_47] : memref<8x128xf32, #tpu.memory_space<vmem>>, vector<8x128xf32>
      tpu.vector_store %arg12[%c0_46, %c0_47], %93 {strides = array<i32>} : memref<8x128xf32, #tpu.memory_space<vmem>>, vector<8x128xf32>,
    } else {
    }
    %c0 = arith.constant 0 : index
    %c0_1 = arith.constant 0 : index
    %3 = vector.load %arg11[%c0, %c0_1] : memref<8x128xf32, #tpu.memory_space<vmem>>, vector<8x128xf32>
    %4 = arith.truncf %3 : vector<8x128xf32> to vector<8x128xbf16>
    %c0_2 = arith.constant 0 : index
    %c0_3 = arith.constant 0 : index
    %5 = vector.load %arg6[%c0_2, %c0_3] : memref<128x128xbf16, #tpu.memory_space<vmem>>, vector<128x128xbf16>
    %cst = arith.constant dense<0.000000e+00> : vector<8x128xf32>
    %6 = tpu.matmul %4, %5, %cst {dimension_numbers = #tpu.dot_dimension_numbers<[1], [0], [0], [1], [0, 0, 1, 1], [], []>} : vector<8x128xbf16>, vector<128x128xbf16>, vector<8x128xf32> -> vector<8x128xf32>
    %c0_4 = arith.constant 0 : index
    %c0_5 = arith.constant 0 : index
    %7 = vector.load %arg7[%c0_4, %c0_5] : memref<1x128xf32, #tpu.memory_space<vmem>>, vector<1x128xf32>
    %8 = vector.broadcast %7 : vector<1x128xf32> to vector<8x128xf32>
    %9 = arith.addf %6, %8 : vector<8x128xf32>
    %10 = arith.mulf %9, %9 : vector<8x128xf32>
    %11 = arith.mulf %9, %10 : vector<8x128xf32>
    %cst_6 = arith.constant 4.471500e-02 : f32
    %12 = vector.broadcast %cst_6 : f32 to vector<8x128xf32>
    %13 = arith.mulf %12, %11 : vector<8x128xf32>
    %14 = arith.addf %9, %13 : vector<8x128xf32>
    %cst_7 = arith.constant 0.797884583 : f32
    %15 = vector.broadcast %cst_7 : f32 to vector<8x128xf32>
    %16 = arith.mulf %15, %14 : vector<8x128xf32>
    %17 = math.tanh %16 : vector<8x128xf32>
    %cst_8 = arith.constant 1.000000e+00 : f32
    %18 = vector.broadcast %cst_8 : f32 to vector<8x128xf32>
    %19 = arith.addf %18, %17 : vector<8x128xf32>
    %cst_9 = arith.constant 5.000000e-01 : f32
    %20 = vector.broadcast %cst_9 : f32 to vector<8x128xf32>
    %21 = arith.mulf %20, %19 : vector<8x128xf32>
    %22 = arith.mulf %9, %21 : vector<8x128xf32>
    %c0_10 = arith.constant 0 : index
    %c0_11 = arith.constant 0 : index
    %23 = vector.load %arg12[%c0_10, %c0_11] : memref<8x128xf32, #tpu.memory_space<vmem>>, vector<8x128xf32>
    %24 = arith.truncf %22 : vector<8x128xf32> to vector<8x128xbf16>
    %c0_12 = arith.constant 0 : index
    %c0_13 = arith.constant 0 : index
    %25 = vector.load %arg8[%c0_12, %c0_13] : memref<128x128xbf16, #tpu.memory_space<vmem>>, vector<128x128xbf16>
    %cst_14 = arith.constant dense<0.000000e+00> : vector<8x128xf32>
    %26 = tpu.matmul %24, %25, %cst_14 {dimension_numbers = #tpu.dot_dimension_numbers<[1], [0], [0], [1], [0, 0, 1, 1], [], []>} : vector<8x128xbf16>, vector<128x128xbf16>, vector<8x128xf32> -> vector<8x128xf32>
    %27 = arith.addf %23, %26 : vector<8x128xf32>
    %c0_15 = arith.constant 0 : index
    %c0_16 = arith.constant 0 : index
    %28 = vector.load %arg12[%c0_15, %c0_16] : memref<8x128xf32, #tpu.memory_space<vmem>>, vector<8x128xf32>
    tpu.vector_store %arg12[%c0_15, %c0_16], %27 {strides = array<i32>} : memref<8x128xf32, #tpu.memory_space<vmem>>, vector<8x128xf32>,
    %c1_i32 = arith.constant 1 : i32
    %29 = arith.cmpi eq, %arg1, %c1_i32 : i32
    %30 = arith.extui %29 : i1 to i32
    %c0_i32_17 = arith.constant 0 : i32
    %31 = arith.cmpi ne, %30, %c0_i32_17 : i32
    scf.if %31 {
      %c0_18 = arith.constant 0 : index
      %c0_19 = arith.constant 0 : index
      %32 = vector.load %arg11[%c0_18, %c0_19] : memref<8x128xf32, #tpu.memory_space<vmem>>, vector<8x128xf32>
      %c0_20 = arith.constant 0 : index
      %c0_21 = arith.constant 0 : index
      %33 = vector.load %arg12[%c0_20, %c0_21] : memref<8x128xf32, #tpu.memory_space<vmem>>, vector<8x128xf32>
      %34 = arith.addf %32, %33 : vector<8x128xf32>
      %c1 = arith.constant 1 : index
      %c0_22 = arith.constant 0 : index
      %35 = vector.load %arg9[%c1, %c0_22] : memref<6x128xf32, #tpu.memory_space<vmem>>, vector<1x128xf32>
      %36 = vector.broadcast %35 : vector<1x128xf32> to vector<8x128xf32>
      %37 = arith.addf %34, %36 : vector<8x128xf32>
      %c4 = arith.constant 4 : index
      %c0_23 = arith.constant 0 : index
      %38 = vector.load %arg9[%c4, %c0_23] : memref<6x128xf32, #tpu.memory_space<vmem>>, vector<1x128xf32>
      %c5 = arith.constant 5 : index
      %c0_24 = arith.constant 0 : index
      %39 = vector.load %arg9[%c5, %c0_24] : memref<6x128xf32, #tpu.memory_space<vmem>>, vector<1x128xf32>
      %cst_25 = arith.constant dense<0.000000e+00> : vector<8xf32>
      %40 = vector.multi_reduction <add>, %37, %cst_25 [1] : vector<8x128xf32> to vector<8xf32>
      %41 = vector.shape_cast %40 : vector<8xf32> to vector<8x1xf32>
      %cst_26 = arith.constant 1.280000e+02 : f32
      %42 = vector.broadcast %cst_26 : f32 to vector<8x1xf32>
      %43 = arith.divf %41, %42 : vector<8x1xf32>
      %44 = vector.broadcast %43 : vector<8x1xf32> to vector<8x128xf32>
      %45 = arith.subf %37, %44 : vector<8x128xf32>
      %46 = arith.mulf %45, %45 : vector<8x128xf32>
      %cst_27 = arith.constant dense<0.000000e+00> : vector<8xf32>
      %47 = vector.multi_reduction <add>, %46, %cst_27 [1] : vector<8x128xf32> to vector<8xf32>
      %48 = vector.shape_cast %47 : vector<8xf32> to vector<8x1xf32>
      %cst_28 = arith.constant 1.280000e+02 : f32
      %49 = vector.broadcast %cst_28 : f32 to vector<8x1xf32>
      %50 = arith.divf %48, %49 : vector<8x1xf32>
      %51 = vector.broadcast %43 : vector<8x1xf32> to vector<8x128xf32>
      %52 = arith.subf %37, %51 : vector<8x128xf32>
      %cst_29 = arith.constant 9.99999974E-6 : f32
      %53 = vector.broadcast %cst_29 : f32 to vector<8x1xf32>
      %54 = arith.addf %50, %53 : vector<8x1xf32>
      %55 = math.rsqrt %54 : vector<8x1xf32>
      %56 = vector.broadcast %55 : vector<8x1xf32> to vector<8x128xf32>
      %57 = arith.mulf %52, %56 : vector<8x128xf32>
      %58 = vector.broadcast %38 : vector<1x128xf32> to vector<8x128xf32>
      %59 = arith.mulf %57, %58 : vector<8x128xf32>
      %60 = vector.broadcast %39 : vector<1x128xf32> to vector<8x128xf32>
      %61 = arith.addf %59, %60 : vector<8x128xf32>
      %62 = arith.truncf %61 : vector<8x128xf32> to vector<8x128xbf16>
      %c0_30 = arith.constant 0 : index
      %c0_31 = arith.constant 0 : index
      %c0_32 = arith.constant 0 : index
      %63 = vector.load %arg10[%c0_30, %c0_31, %c0_32] : memref<1x8x128xbf16, #tpu.memory_space<vmem>>, vector<1x8x128xbf16>
      %64 = vector.shape_cast %63 : vector<1x8x128xbf16> to vector<8x128xbf16>
      %65 = vector.shape_cast %62 : vector<8x128xbf16> to vector<1x8x128xbf16>
      tpu.vector_store %arg10[%c0_30, %c0_31, %c0_32], %65 {strides = array<i32>} : memref<1x8x128xbf16, #tpu.memory_space<vmem>>, vector<1x8x128xbf16>,
    } else {
    }
    return
  }
  func.func @transform_0(%arg0: i32, %arg1: i32) -> (i32, i32, i32) {
    %c0_i32 = arith.constant 0 : i32
    %c0_i32_0 = arith.constant 0 : i32
    %c0_i32_1 = arith.constant 0 : i32
    return %arg0, %c0_i32, %c0_i32_0 : i32, i32, i32
  }
  func.func @transform_1(%arg0: i32, %arg1: i32) -> (i32, i32) {
    %c0_i32 = arith.constant 0 : i32
    %c0_i32_0 = arith.constant 0 : i32
    %c0_i32_1 = arith.constant 0 : i32
    return %c0_i32, %c0_i32_0 : i32, i32
  }
  func.func @transform_2(%arg0: i32, %arg1: i32) -> (i32, i32) {
    %c0_i32 = arith.constant 0 : i32
    %c0_i32_0 = arith.constant 0 : i32
    %c0_i32_1 = arith.constant 0 : i32
    return %c0_i32, %c0_i32_0 : i32, i32
  }
  func.func @transform_3(%arg0: i32, %arg1: i32) -> (i32, i32) {
    %c0_i32 = arith.constant 0 : i32
    %c0_i32_0 = arith.constant 0 : i32
    %c0_i32_1 = arith.constant 0 : i32
    return %c0_i32, %c0_i32_0 : i32, i32
  }
  func.func @transform_4(%arg0: i32, %arg1: i32) -> (i32, i32) {
    %c0_i32 = arith.constant 0 : i32
    %c0_i32_0 = arith.constant 0 : i32
    return %c0_i32, %arg1 : i32, i32
  }
  func.func @transform_5(%arg0: i32, %arg1: i32) -> (i32, i32) {
    %c0_i32 = arith.constant 0 : i32
    %c0_i32_0 = arith.constant 0 : i32
    return %c0_i32, %arg1 : i32, i32
  }
  func.func @transform_6(%arg0: i32, %arg1: i32) -> (i32, i32) {
    %c0_i32 = arith.constant 0 : i32
    %c0_i32_0 = arith.constant 0 : i32
    return %arg1, %c0_i32 : i32, i32
  }
  func.func @transform_7(%arg0: i32, %arg1: i32) -> (i32, i32) {
    %c0_i32 = arith.constant 0 : i32
    %c0_i32_0 = arith.constant 0 : i32
    %c0_i32_1 = arith.constant 0 : i32
    return %c0_i32, %c0_i32_0 : i32, i32
  }
  func.func @transform_8(%arg0: i32, %arg1: i32) -> (i32, i32, i32) {
    %c0_i32 = arith.constant 0 : i32
    %c0_i32_0 = arith.constant 0 : i32
    %c0_i32_1 = arith.constant 0 : i32
    return %arg0, %c0_i32, %c0_i32_0 : i32, i32, i32
  }
}

</mosaic_0001>

<llo_original>
// kernel: tpu_custom_call.1
$region0: #{tpu_custom_call.1}
  #allocation0 [shape = 'u32[]', space=smem, size = 0x4, offset = 0x4, fixed_abs, tag = 'smem constant byte address 0x4 - core index']
  #allocation1 [shape = 'u32[72,128]{1,0:T(1,128)}', space=vmem, size = 0x9000, scoped, tag = 'internal scratch']
  #allocation2 [shape = 'f32[8,128]{1,0:T(8,128)}', space=vmem, size = 0x1000, scoped, tag = 'scratch operand']
  #allocation3 [shape = 'f32[8,128]{1,0:T(8,128)}', space=vmem, size = 0x1000, scoped, tag = 'scratch operand']
  %s0 = inlined_call_operand.hbm [shape: bf16[2,8,128], index: 0, kind: input, shape index: {}]
  %s1 = inlined_call_operand.hbm [shape: bf16[128,384], index: 1, kind: input, shape index: {}]
  %s2 = inlined_call_operand.hbm [shape: f32[1,384], index: 2, kind: input, shape index: {}]
  %s3 = inlined_call_operand.hbm [shape: bf16[128,128], index: 3, kind: input, shape index: {}]
  %s4 = inlined_call_operand.hbm [shape: bf16[128,256], index: 4, kind: input, shape index: {}]
  %s5 = inlined_call_operand.vmem [shape: f32[1,256], index: 5, kind: input, shape index: {}]
  %s6 = inlined_call_operand.hbm [shape: bf16[256,128], index: 6, kind: input, shape index: {}]
  %s7 = inlined_call_operand.hbm [shape: f32[6,128], index: 7, kind: input, shape index: {}]
  %s8 = inlined_call_operand.hbm [shape: bf16[2,8,128], index: 8, kind: output, shape index: {}]
  %s9 = sld [smem:[#allocation0]]
  $region101: #{tpu_custom_call.1} parent=0
    _
  %s11 = ssub.s32 1, %s9
  %s12 = scalar_select 0, %s11, %s9
  $region1: #{tpu_custom_call.1} parent=0
    #allocation4 [shape = 'u8[4096]{0}', space=vmem, size = 0x1000, scoped, tag = 'input window, operand 0']
    #allocation5 [shape = 's32[2]{0}', space=sflag, size = 0x8, scoped, tag = 'scoped memory for tpu_custom_call.1']
    #allocation6 [shape = 's32[2]{0}', space=sflag, size = 0x8, scoped, tag = 'scoped memory for tpu_custom_call.1']
    #allocation7 [shape = 'u8[98304]{0}', space=vmem, size = 0x18000, scoped, tag = 'input window, operand 1, single buffered']
    #allocation8 [shape = 's32[1]{0}', space=sflag, size = 0x4, scoped, tag = 'scoped memory for tpu_custom_call.1']
    #allocation9 [shape = 'u8[1536]{0}', space=vmem, size = 0x800, scoped, tag = 'input window, operand 2, single buffered']
    #allocation10 [shape = 'u8[32768]{0}', space=vmem, size = 0x8000, scoped, tag = 'input window, operand 3, single buffered']
    #allocation11 [shape = 's32[1]{0}', space=sflag, size = 0x4, scoped, tag = 'scoped memory for tpu_custom_call.1']
    #allocation12 [shape = 'u8[65536]{0}', space=vmem, size = 0x10000, scoped, tag = 'input window, operand 4']
    #allocation13 [shape = 'u8[65536]{0}', space=vmem, size = 0x10000, scoped, tag = 'input window, operand 6']
    #allocation14 [shape = 'u8[4096]{0}', space=vmem, size = 0x1000, scoped, tag = 'input window, operand 7, single buffered']
    #allocation15 [shape = 'u8[4096]{0}', space=vmem, size = 0x1000, scoped, tag = 'output window, operand 0']
    %13 = vsyncpa [#allocation5], 0
    %s14 = scalar_lea.sflag [#allocation5], 1
    %15 = vsyncpa %s14, 0
    %16 = vsyncpa [#allocation8], 0
    %17 = vsyncpa [#allocation11], 0
    %18 = vsyncpa [#allocation6], 0
    %s19 = scalar_lea.sflag [#allocation6], 1
    %20 = vsyncpa %s19, 0
    loop: start=0, step=1, limit=6
    $region2: #{tpu_custom_call.1} parent=1 // loop_pre_header
      _
    $region3: #{tpu_custom_call.1} parent=1 // loop_header
      %s22 = sphi 0, %s26
      %p23 = scmp.ge.s32.totalorder %s22, 6
      %s29 = sphi 0, %s41
      %s30 = sphi 0, %s37
      %s31 = sphi 0, %s29
      %s32 = sphi 0, %s30
      %s33 = sphi 0, %s31
      %s34 = sphi 0, %s32
      %s44 = sphi 0, %s46
      %s47 = sphi 0, %s44
      %s48 = sphi 0, %s47
      %s64 = sphi 0, %s48
      %s68 = sphi 0, %s68
      %s70 = sphi 0, %s68
      %s71 = sphi 0, %s70
      %s85 = sphi 0, %s71
      %s89 = sphi 0, %s89
      %s91 = sphi 0, %s89
      %s92 = sphi 0, %s91
      %s106 = sphi 0, %s92
      %s110 = sphi 0, %s110
      %s112 = sphi 0, %s110
      %s113 = sphi 0, %s112
      %s127 = sphi 0, %s113
      %s133 = sphi 0, %s135
      %s136 = sphi 0, %s133
      %s137 = sphi 0, %s136
      %s153 = sphi 0, %s137
      %s159 = sphi 0, %s161
      %s162 = sphi 0, %s159
      %s163 = sphi 0, %s162
      %s179 = sphi 0, %s163
      %s185 = sphi 0, %s187
      %s188 = sphi 0, %s185
      %s189 = sphi 0, %s188
      %s205 = sphi 0, %s189
      %s209 = sphi 0, %s209
      %s211 = sphi 0, %s209
      %s212 = sphi 0, %s211
      %s226 = sphi 0, %s212
      %s232 = sphi 0, %s234
      %s235 = sphi 0, %s232
      %s236 = sphi 0, %s235
      %s252 = sphi 0, %s236
    $region4: #{tpu_custom_call.1} parent=1 // loop_header_branch
      %25 = sbr.rel (%p23) target = $region8
    $region5: #{tpu_custom_call.1} parent=1 // loop_body
      %s27 = ssub.s32 %s22, 1
      %s28 = ssub.s32 %s22, 2
      %s35 = sadd.s32 1, %s30
      %p36 = scmp.ge.s32.totalorder %s35, 2
      %s37 = scalar_select %p36, 0, %s35
      %s38 = sadd.s32 1, %s29
      %s39 = scalar_select %p36, %s38, %s29
      %p40 = scmp.ge.s32.totalorder %s39, 2
      %s41 = scalar_select %p40, 0, %s39
      %s42 = ssub.s32 %s29, %s41
      %p43 = scmp.eq.s32.totalorder %s42, 0
      %s45 = sadd.s32 %s44, 1
      %s46 = scalar_select %p43, %s44, %s45
      %p49 = pneg %p43
      %p50 = scmp.eq.s32.totalorder %s22, 3
      %p51 = por %p49, %p50
      %p52 = scmp.ne.s32.totalorder %s44, %s47
      %p53 = scmp.eq.s32.totalorder %s22, 0
      %p54 = por %p52, %p53
      %p55 = scmp.ne.s32.totalorder %s44, %s47
      %p56 = scmp.eq.s32.totalorder %s27, 3
      %p57 = por %p55, %p56
      %p58 = scmp.ne.s32.totalorder %s47, %s48
      %p59 = scmp.eq.s32.totalorder %s27, 0
      %p60 = por %p58, %p59
      %p61 = scmp.ne.s32.totalorder %s47, %s48
      %p62 = scmp.eq.s32.totalorder %s28, 3
      %p63 = por %p61, %p62
      %p65 = scmp.ne.s32.totalorder %s48, %s64
      %p66 = scmp.eq.s32.totalorder %s28, 0
      %p67 = por %p65, %p66
      %s69 = sadd.s32 %s68, 1
      %p72 = scmp.eq.s32.totalorder %s22, 3
      %p73 = scmp.ne.s32.totalorder %s68, %s70
      %p74 = scmp.eq.s32.totalorder %s22, 0
      %p75 = por %p73, %p74
      %p76 = scmp.ne.s32.totalorder %s68, %s70
      %p77 = scmp.eq.s32.totalorder %s27, 3
      %p78 = por %p76, %p77
      %p79 = scmp.ne.s32.totalorder %s70, %s71
      %p80 = scmp.eq.s32.totalorder %s27, 0
      %p81 = por %p79, %p80
      %p82 = scmp.ne.s32.totalorder %s70, %s71
      %p83 = scmp.eq.s32.totalorder %s28, 3
      %p84 = por %p82, %p83
      %p86 = scmp.ne.s32.totalorder %s71, %s85
      %p87 = scmp.eq.s32.totalorder %s28, 0
      %p88 = por %p86, %p87
      %s90 = sadd.s32 %s89, 1
      %p93 = scmp.eq.s32.totalorder %s22, 3
      %p94 = scmp.ne.s32.totalorder %s89, %s91
      %p95 = scmp.eq.s32.totalorder %s22, 0
      %p96 = por %p94, %p95
      %p97 = scmp.ne.s32.totalorder %s89, %s91
      %p98 = scmp.eq.s32.totalorder %s27, 3
      %p99 = por %p97, %p98
      %p100 = scmp.ne.s32.totalorder %s91, %s92
      %p101 = scmp.eq.s32.totalorder %s27, 0
      %p102 = por %p100, %p101
      %p103 = scmp.ne.s32.totalorder %s91, %s92
      %p104 = scmp.eq.s32.totalorder %s28, 3
      %p105 = por %p103, %p104
      %p107 = scmp.ne.s32.totalorder %s92, %s106
      %p108 = scmp.eq.s32.totalorder %s28, 0
      %p109 = por %p107, %p108
      %s111 = sadd.s32 %s110, 1
      %p114 = scmp.eq.s32.totalorder %s22, 3
      %p115 = scmp.ne.s32.totalorder %s110, %s112
      %p116 = scmp.eq.s32.totalorder %s22, 0
      %p117 = por %p115, %p116
      %p118 = scmp.ne.s32.totalorder %s110, %s112
      %p119 = scmp.eq.s32.totalorder %s27, 3
      %p120 = por %p118, %p119
      %p121 = scmp.ne.s32.totalorder %s112, %s113
      %p122 = scmp.eq.s32.totalorder %s27, 0
      %p123 = por %p121, %p122
      %p124 = scmp.ne.s32.totalorder %s112, %s113
      %p125 = scmp.eq.s32.totalorder %s28, 3
      %p126 = por %p124, %p125
      %p128 = scmp.ne.s32.totalorder %s113, %s127
      %p129 = scmp.eq.s32.totalorder %s28, 0
      %p130 = por %p128, %p129
      %s131 = ssub.s32 %s30, %s37
      %p132 = scmp.eq.s32.totalorder %s131, 0
      %s134 = sadd.s32 %s133, 1
      %s135 = scalar_select %p132, %s133, %s134
      %p138 = pneg %p132
      %p139 = scmp.eq.s32.totalorder %s22, 3
      %p140 = por %p138, %p139
      %p141 = scmp.ne.s32.totalorder %s133, %s136
      %p142 = scmp.eq.s32.totalorder %s22, 0
      %p143 = por %p141, %p142
      %p144 = scmp.ne.s32.totalorder %s133, %s136
      %p145 = scmp.eq.s32.totalorder %s27, 3
      %p146 = por %p144, %p145
      %p147 = scmp.ne.s32.totalorder %s136, %s137
      %p148 = scmp.eq.s32.totalorder %s27, 0
      %p149 = por %p147, %p148
      %p150 = scmp.ne.s32.totalorder %s136, %s137
      %p151 = scmp.eq.s32.totalorder %s28, 3
      %p152 = por %p150, %p151
      %p154 = scmp.ne.s32.totalorder %s137, %s153
      %p155 = scmp.eq.s32.totalorder %s28, 0
      %p156 = por %p154, %p155
      %s157 = ssub.s32 %s30, %s37
      %p158 = scmp.eq.s32.totalorder %s157, 0
      %s160 = sadd.s32 %s159, 1
      %s161 = scalar_select %p158, %s159, %s160
      %p164 = pneg %p158
      %p165 = scmp.eq.s32.totalorder %s22, 3
      %p166 = por %p164, %p165
      %p167 = scmp.ne.s32.totalorder %s159, %s162
      %p168 = scmp.eq.s32.totalorder %s22, 0
      %p169 = por %p167, %p168
      %p170 = scmp.ne.s32.totalorder %s159, %s162
      %p171 = scmp.eq.s32.totalorder %s27, 3
      %p172 = por %p170, %p171
      %p173 = scmp.ne.s32.totalorder %s162, %s163
      %p174 = scmp.eq.s32.totalorder %s27, 0
      %p175 = por %p173, %p174
      %p176 = scmp.ne.s32.totalorder %s162, %s163
      %p177 = scmp.eq.s32.totalorder %s28, 3
      %p178 = por %p176, %p177
      %p180 = scmp.ne.s32.totalorder %s163, %s179
      %p181 = scmp.eq.s32.totalorder %s28, 0
      %p182 = por %p180, %p181
      %s183 = ssub.s32 %s30, %s37
      %p184 = scmp.eq.s32.totalorder %s183, 0
      %s186 = sadd.s32 %s185, 1
      %s187 = scalar_select %p184, %s185, %s186
      %p190 = pneg %p184
      %p191 = scmp.eq.s32.totalorder %s22, 3
      %p192 = por %p190, %p191
      %p193 = scmp.ne.s32.totalorder %s185, %s188
      %p194 = scmp.eq.s32.totalorder %s22, 0
      %p195 = por %p193, %p194
      %p196 = scmp.ne.s32.totalorder %s185, %s188
      %p197 = scmp.eq.s32.totalorder %s27, 3
      %p198 = por %p196, %p197
      %p199 = scmp.ne.s32.totalorder %s188, %s189
      %p200 = scmp.eq.s32.totalorder %s27, 0
      %p201 = por %p199, %p200
      %p202 = scmp.ne.s32.totalorder %s188, %s189
      %p203 = scmp.eq.s32.totalorder %s28, 3
      %p204 = por %p202, %p203
      %p206 = scmp.ne.s32.totalorder %s189, %s205
      %p207 = scmp.eq.s32.totalorder %s28, 0
      %p208 = por %p206, %p207
      %s210 = sadd.s32 %s209, 1
      %p213 = scmp.eq.s32.totalorder %s22, 3
      %p214 = scmp.ne.s32.totalorder %s209, %s211
      %p215 = scmp.eq.s32.totalorder %s22, 0
      %p216 = por %p214, %p215
      %p217 = scmp.ne.s32.totalorder %s209, %s211
      %p218 = scmp.eq.s32.totalorder %s27, 3
      %p219 = por %p217, %p218
      %p220 = scmp.ne.s32.totalorder %s211, %s212
      %p221 = scmp.eq.s32.totalorder %s27, 0
      %p222 = por %p220, %p221
      %p223 = scmp.ne.s32.totalorder %s211, %s212
      %p224 = scmp.eq.s32.totalorder %s28, 3
      %p225 = por %p223, %p224
      %p227 = scmp.ne.s32.totalorder %s212, %s226
      %p228 = scmp.eq.s32.totalorder %s28, 0
      %p229 = por %p227, %p228
      %s230 = ssub.s32 %s29, %s41
      %p231 = scmp.eq.s32.totalorder %s230, 0
      %s233 = sadd.s32 %s232, 1
      %s234 = scalar_select %p231, %s232, %s233
      %p237 = pneg %p231
      %p238 = scmp.eq.s32.totalorder %s22, 3
      %p239 = por %p237, %p238
      %p240 = scmp.ne.s32.totalorder %s232, %s235
      %p241 = scmp.eq.s32.totalorder %s22, 0
      %p242 = por %p240, %p241
      %p243 = scmp.ne.s32.totalorder %s232, %s235
      %p244 = scmp.eq.s32.totalorder %s27, 3
      %p245 = por %p243, %p244
      %p246 = scmp.ne.s32.totalorder %s235, %s236
      %p247 = scmp.eq.s32.totalorder %s27, 0
      %p248 = por %p246, %p247
      %p249 = scmp.ne.s32.totalorder %s235, %s236
      %p250 = scmp.eq.s32.totalorder %s28, 3
      %p251 = por %p249, %p250
      %p253 = scmp.ne.s32.totalorder %s236, %s252
      %p254 = scmp.eq.s32.totalorder %s28, 0
      %p255 = por %p253, %p254
      %p256 = scmp.le.s32.totalorder 1, %s22
      %p257 = scmp.lt.s32.totalorder %s22, 5
      %p258 = pnand %p256, %p257
      %p259 = pneg %p258
      // Predicated region
      $region9: #{tpu_custom_call.1} parent=5 // pred_check
        _
      $region10: #{tpu_custom_call.1} parent=5 // pred_check_branch
        %261 = sbr.rel (%p258) target = $region12
      $region11: #{tpu_custom_call.1} parent=5 // pred_region
        %s262 = ssub.s32 %s22, 1
        // Predicated region
        $region13: #{tpu_custom_call.1} parent=11 // pred_check
          %p263 = pneg %p81
        $region14: #{tpu_custom_call.1} parent=11 // pred_check_branch
          %265 = sbr.rel (%p263) target = $region16
        $region15: #{tpu_custom_call.1} parent=11 // pred_region
          %267 = vsyncadd [#allocation8], 0
          %s268 = sshll.u32 %s1, 4
          %s269 = int_to_ptr.hbm [resolvable:$true] %s268
          %s270 = sshll.u32 [#allocation7], 4
          %s271 = int_to_ptr.vmem [resolvable:$true] %s270
          %276 = dma.hbm_to_vmem [thread:$0]  %s269, 3072, %s271, [#allocation8], 192, 192, 12
        $region16: #{tpu_custom_call.1} parent=11 // pred_fallthru
          _
        // Predicated region
        $region17: #{tpu_custom_call.1} parent=11 // pred_check
          %p277 = pneg %p102
        $region18: #{tpu_custom_call.1} parent=11 // pred_check_branch
          %279 = sbr.rel (%p277) target = $region20
        $region19: #{tpu_custom_call.1} parent=11 // pred_region
          %281 = vsyncadd [#allocation8], 0
          %s283 = sshll.u32 %s2, 4
          %s284 = int_to_ptr.hbm [resolvable:$true] %s283
          %s285 = sshll.u32 [#allocation9], 4
          %s286 = int_to_ptr.vmem [resolvable:$true] %s285
          %288 = dma.hbm_to_vmem [thread:$0]  %s284, 48, %s286, [#allocation8]
        $region20: #{tpu_custom_call.1} parent=11 // pred_fallthru
          _
        // Predicated region
        $region21: #{tpu_custom_call.1} parent=11 // pred_check
          %p289 = pneg %p123
        $region22: #{tpu_custom_call.1} parent=11 // pred_check_branch
          %291 = sbr.rel (%p289) target = $region24
        $region23: #{tpu_custom_call.1} parent=11 // pred_region
          %293 = vsyncadd [#allocation11], 0
          %s294 = sshll.u32 %s3, 4
          %s295 = int_to_ptr.hbm [resolvable:$true] %s294
          %s296 = sshll.u32 [#allocation10], 4
          %s297 = int_to_ptr.vmem [resolvable:$true] %s296
          %302 = dma.hbm_to_vmem [thread:$0]  %s295, 1024, %s297, [#allocation11], 64, 64, 4
        $region24: #{tpu_custom_call.1} parent=11 // pred_fallthru
          _
        // Predicated region
        $region25: #{tpu_custom_call.1} parent=11 // pred_check
          %p303 = pneg %p222
        $region26: #{tpu_custom_call.1} parent=11 // pred_check_branch
          %305 = sbr.rel (%p303) target = $region28
        $region27: #{tpu_custom_call.1} parent=11 // pred_region
          %307 = vsyncadd [#allocation8], 0
          %s309 = sshll.u32 %s7, 4
          %s310 = int_to_ptr.hbm [resolvable:$true] %s309
          %s311 = sshll.u32 [#allocation14], 4
          %s312 = int_to_ptr.vmem [resolvable:$true] %s311
          %314 = dma.hbm_to_vmem [thread:$0]  %s310, 128, %s312, [#allocation8]
        $region28: #{tpu_custom_call.1} parent=11 // pred_fallthru
          _
      $region12: #{tpu_custom_call.1} parent=5 // pred_fallthru
        _
      %p315 = scmp.lt.s32.totalorder %s22, 4
      // Predicated region
      $region29: #{tpu_custom_call.1} parent=5 // pred_check
        %p316 = pneg %p315
      $region30: #{tpu_custom_call.1} parent=5 // pred_check_branch
        %318 = sbr.rel (%p316) target = $region32
      $region31: #{tpu_custom_call.1} parent=5 // pred_region
        // Predicated region
        $region33: #{tpu_custom_call.1} parent=31 // pred_check
          %p319 = pneg %p54
        $region34: #{tpu_custom_call.1} parent=31 // pred_check_branch
          %321 = sbr.rel (%p319) target = $region36
        $region35: #{tpu_custom_call.1} parent=31 // pred_region
          %s322 = sand.u32 %s22, 1
          %s323 = scalar_lea.sflag [#allocation5], %s322
          %s324 = sand.u32 %s44, 1
          %s325 = smul.addr %s324, 4
          %s326 = scalar_lea.vmem [#allocation4], %s325
          %328 = vsyncadd %s323, 0
          %s329 = smul.addr %s29, 4
          %s330 = scalar_lea.hbm %s0, %s329
          %s332 = sshll.u32 %s330, 4
          %s333 = int_to_ptr.hbm [resolvable:$true] %s332
          %s334 = sshll.u32 %s326, 4
          %s335 = int_to_ptr.vmem [resolvable:$true] %s334
          %337 = dma.hbm_to_vmem [thread:$0]  %s333, 64, %s335, %s323
        $region36: #{tpu_custom_call.1} parent=31 // pred_fallthru
          _
        // Predicated region
        $region37: #{tpu_custom_call.1} parent=31 // pred_check
          %p338 = pneg %p143
        $region38: #{tpu_custom_call.1} parent=31 // pred_check_branch
          %340 = sbr.rel (%p338) target = $region40
        $region39: #{tpu_custom_call.1} parent=31 // pred_region
          %s341 = sand.u32 %s22, 1
          %s342 = scalar_lea.sflag [#allocation5], %s341
          %s343 = sand.u32 %s133, 1
          %s344 = smul.addr %s343, 64
          %s345 = scalar_lea.vmem [#allocation12], %s344
          %347 = vsyncadd %s342, 0
          %s348 = smul.addr %s30, 4
          %s349 = scalar_lea.hbm %s4, %s348
          %s350 = sshll.u32 %s349, 4
          %s351 = int_to_ptr.hbm [resolvable:$true] %s350
          %s352 = sshll.u32 %s345, 4
          %s353 = int_to_ptr.vmem [resolvable:$true] %s352
          %358 = dma.hbm_to_vmem [thread:$0]  %s351, 1024, %s353, %s342, 128, 64, 4
        $region40: #{tpu_custom_call.1} parent=31 // pred_fallthru
          _
        // Predicated region
        $region41: #{tpu_custom_call.1} parent=31 // pred_check
          %p359 = pneg %p169
        $region42: #{tpu_custom_call.1} parent=31 // pred_check_branch
          %361 = sbr.rel (%p359) target = $region44
        $region43: #{tpu_custom_call.1} parent=31 // pred_region
          %p362 = scmp.lt.s32.totalorder %s30, 1
          %s363 = scalar_select %p362, %s30, 1
          %s364 = scalar_lea.vmem %s5, %s363
        $region44: #{tpu_custom_call.1} parent=31 // pred_fallthru
          _
        // Predicated region
        $region45: #{tpu_custom_call.1} parent=31 // pred_check
          %p365 = pneg %p195
        $region46: #{tpu_custom_call.1} parent=31 // pred_check_branch
          %367 = sbr.rel (%p365) target = $region48
        $region47: #{tpu_custom_call.1} parent=31 // pred_region
          %s368 = sand.u32 %s22, 1
          %s369 = scalar_lea.sflag [#allocation5], %s368
          %s370 = sand.u32 %s185, 1
          %s371 = smul.addr %s370, 64
          %s372 = scalar_lea.vmem [#allocation13], %s371
          %s373 = smul.u32 16, %s30
          %375 = vsyncadd %s369, 0
          %s376 = smul.addr %s373, 4
          %s377 = scalar_lea.hbm %s6, %s376
          %s378 = sshll.u32 %s377, 4
          %s379 = int_to_ptr.hbm [resolvable:$true] %s378
          %s380 = sshll.u32 %s372, 4
          %s381 = int_to_ptr.vmem [resolvable:$true] %s380
          %386 = dma.hbm_to_vmem [thread:$0]  %s379, 1024, %s381, %s369, 64, 64, 4
        $region48: #{tpu_custom_call.1} parent=31 // pred_fallthru
          _
      $region32: #{tpu_custom_call.1} parent=5 // pred_fallthru
        _
      %p387 = scmp.le.s32.totalorder 1, %s22
      %p388 = scmp.lt.s32.totalorder %s22, 5
      %p389 = pnand %p387, %p388
      %p390 = pneg %p389
      // Predicated region
      $region49: #{tpu_custom_call.1} parent=5 // pred_check
        _
      $region50: #{tpu_custom_call.1} parent=5 // pred_check_branch
        %392 = sbr.rel (%p389) target = $region52
      $region51: #{tpu_custom_call.1} parent=5 // pred_region
        %s393 = ssub.s32 %s22, 1
        %s394 = sand.u32 %s27, 1
        %s395 = scalar_lea.sflag [#allocation5], %s394
        %s396 = sand.u32 %s47, 1
        %s397 = smul.addr %s396, 4
        %s398 = scalar_lea.vmem [#allocation4], %s397
        // Predicated region
        $region53: #{tpu_custom_call.1} parent=51 // pred_check
          %p399 = pneg %p60
        $region54: #{tpu_custom_call.1} parent=51 // pred_check_branch
          %401 = sbr.rel (%p399) target = $region56
        $region55: #{tpu_custom_call.1} parent=51 // pred_region
          %403 = dma.done %s395, 64
        $region56: #{tpu_custom_call.1} parent=51 // pred_fallthru
          _
        // Predicated region
        $region57: #{tpu_custom_call.1} parent=51 // pred_check
          %p404 = pneg %p81
        $region58: #{tpu_custom_call.1} parent=51 // pred_check_branch
          %406 = sbr.rel (%p404) target = $region60
        $region59: #{tpu_custom_call.1} parent=51 // pred_region
          %408 = dma.done [#allocation8], 3072
        $region60: #{tpu_custom_call.1} parent=51 // pred_fallthru
          _
        // Predicated region
        $region61: #{tpu_custom_call.1} parent=51 // pred_check
          %p409 = pneg %p102
        $region62: #{tpu_custom_call.1} parent=51 // pred_check_branch
          %411 = sbr.rel (%p409) target = $region64
        $region63: #{tpu_custom_call.1} parent=51 // pred_region
          %413 = dma.done [#allocation8], 48
        $region64: #{tpu_custom_call.1} parent=51 // pred_fallthru
          _
        // Predicated region
        $region65: #{tpu_custom_call.1} parent=51 // pred_check
          %p414 = pneg %p123
        $region66: #{tpu_custom_call.1} parent=51 // pred_check_branch
          %416 = sbr.rel (%p414) target = $region68
        $region67: #{tpu_custom_call.1} parent=51 // pred_region
          %418 = dma.done [#allocation11], 1024
        $region68: #{tpu_custom_call.1} parent=51 // pred_fallthru
          _
        %s419 = sand.u32 %s27, 1
        %s420 = scalar_lea.sflag [#allocation5], %s419
        %s421 = sand.u32 %s136, 1
        %s422 = smul.addr %s421, 64
        %s423 = scalar_lea.vmem [#allocation12], %s422
        // Predicated region
        $region69: #{tpu_custom_call.1} parent=51 // pred_check
          %p424 = pneg %p149
        $region70: #{tpu_custom_call.1} parent=51 // pred_check_branch
          %426 = sbr.rel (%p424) target = $region72
        $region71: #{tpu_custom_call.1} parent=51 // pred_region
          %428 = dma.done %s420, 1024
        $region72: #{tpu_custom_call.1} parent=51 // pred_fallthru
          _
        %s429 = sand.u32 %s27, 1
        %s430 = scalar_lea.sflag [#allocation5], %s429
        %s431 = sand.u32 %s188, 1
        %s432 = smul.addr %s431, 64
        %s433 = scalar_lea.vmem [#allocation13], %s432
        // Predicated region
        $region73: #{tpu_custom_call.1} parent=51 // pred_check
          %p434 = pneg %p201
        $region74: #{tpu_custom_call.1} parent=51 // pred_check_branch
          %436 = sbr.rel (%p434) target = $region76
        $region75: #{tpu_custom_call.1} parent=51 // pred_region
          %438 = dma.done %s430, 1024
        $region76: #{tpu_custom_call.1} parent=51 // pred_fallthru
          _
        // Predicated region
        $region77: #{tpu_custom_call.1} parent=51 // pred_check
          %p439 = pneg %p222
        $region78: #{tpu_custom_call.1} parent=51 // pred_check_branch
          %441 = sbr.rel (%p439) target = $region80
        $region79: #{tpu_custom_call.1} parent=51 // pred_region
          %443 = dma.done [#allocation8], 128
        $region80: #{tpu_custom_call.1} parent=51 // pred_fallthru
          _
        %s444 = sand.u32 %s27, 1
        %s445 = scalar_lea.sflag [#allocation5], %s444
        %s446 = sand.u32 %s47, 1
        %s447 = smul.addr %s446, 4
        %s448 = scalar_lea.vmem [#allocation4], %s447
        %p449 = pneg %p60
        %p450 = pneg %p57
        %p451 = pneg %p81
        %p452 = pneg %p78
        %p453 = pneg %p102
        %p454 = pneg %p99
        %p455 = pneg %p123
        %p456 = pneg %p120
        %s457 = sand.u32 %s27, 1
        %s458 = scalar_lea.sflag [#allocation5], %s457
        %s459 = sand.u32 %s136, 1
        %s460 = smul.addr %s459, 64
        %s461 = scalar_lea.vmem [#allocation12], %s460
        %p462 = pneg %p149
        %p463 = pneg %p146
        %p464 = scmp.lt.s32.totalorder %s32, 1
        %s465 = scalar_select %p464, %s32, 1
        %s466 = scalar_lea.vmem %s5, %s465
        %p467 = pneg %p175
        %p468 = pneg %p172
        %s469 = sand.u32 %s27, 1
        %s470 = scalar_lea.sflag [#allocation5], %s469
        %s471 = sand.u32 %s188, 1
        %s472 = smul.addr %s471, 64
        %s473 = scalar_lea.vmem [#allocation13], %s472
        %p474 = pneg %p201
        %p475 = pneg %p198
        %p476 = pneg %p222
        %p477 = pneg %p219
        %p478 = pneg %p248
        %p479 = pneg %p245
        %s480 = sand.u32 %s235, 1
        %s481 = scalar_lea.sflag [#allocation6], %s480
        %s482 = sand.u32 %s235, 1
        %s483 = smul.addr %s482, 4
        %s484 = scalar_lea.vmem [#allocation15], %s483
        %p485 = scmp.lt.s32.totalorder %s32, 1
        %s486 = scalar_select %p485, %s32, 1
        %s487 = scalar_lea.vmem %s5, %s486
        %s488 = smul.u32 16, %s32
        %p490 = scmp.eq.s32.totalorder %s32, 0
        // Predicated region
        $region81: #{tpu_custom_call.1} parent=51 // pred_check
          %p491 = pneg %p490
        $region82: #{tpu_custom_call.1} parent=51 // pred_check_branch
          %493 = sbr.rel (%p491) target = $region84
        $region83: #{tpu_custom_call.1} parent=51 // pred_region
          %v494 = vld [vmem:[%s398] sm:$0xf]
          %v495 = vld [vmem:[#allocation7] sm:$0xff]
          %v496 = vld [vmem:[#allocation7 + $0x8] sm:$0xf]
          %v497 = vld [vmem:[#allocation7 + $0xc] sm:$0xff]
          %v498 = vld [vmem:[#allocation7 + $0x14] sm:$0xf]
          %v499 = vld [vmem:[#allocation7 + $0x18] sm:$0xff]
          %v500 = vld [vmem:[#allocation7 + $0x20] sm:$0xf]
          %v501 = vld [vmem:[#allocation7 + $0x24] sm:$0xff]
          %v502 = vld [vmem:[#allocation7 + $0x2c] sm:$0xf]
          %v503 = vld [vmem:[#allocation7 + $0x30] sm:$0xff]
          %v504 = vld [vmem:[#allocation7 + $0x38] sm:$0xf]
          %v505 = vld [vmem:[#allocation7 + $0x3c] sm:$0xff]
          %v506 = vld [vmem:[#allocation7 + $0x44] sm:$0xf]
          %v507 = vld [vmem:[#allocation7 + $0x48] sm:$0xff]
          %v508 = vld [vmem:[#allocation7 + $0x50] sm:$0xf]
          %v509 = vld [vmem:[#allocation7 + $0x54] sm:$0xff]
          %v510 = vld [vmem:[#allocation7 + $0x5c] sm:$0xf]
          %v511 = vld [vmem:[#allocation7 + $0x60] sm:$0xff]
          %v512 = vld [vmem:[#allocation7 + $0x68] sm:$0xf]
          %v513 = vld [vmem:[#allocation7 + $0x6c] sm:$0xff]
          %v514 = vld [vmem:[#allocation7 + $0x74] sm:$0xf]
          %v515 = vld [vmem:[#allocation7 + $0x78] sm:$0xff]
          %v516 = vld [vmem:[#allocation7 + $0x80] sm:$0xf]
          %v517 = vld [vmem:[#allocation7 + $0x84] sm:$0xff]
          %v518 = vld [vmem:[#allocation7 + $0x8c] sm:$0xf]
          %v519 = vld [vmem:[#allocation7 + $0x90] sm:$0xff]
          %v520 = vld [vmem:[#allocation7 + $0x98] sm:$0xf]
          %v521 = vld [vmem:[#allocation7 + $0x9c] sm:$0xff]
          %v522 = vld [vmem:[#allocation7 + $0xa4] sm:$0xf]
          %v523 = vld [vmem:[#allocation7 + $0xa8] sm:$0xff]
          %v524 = vld [vmem:[#allocation7 + $0xb0] sm:$0xf]
          %v525 = vld [vmem:[#allocation7 + $0xb4] sm:$0xff]
          %v526 = vld [vmem:[#allocation7 + $0xbc] sm:$0xf]
          %v527 = vld [vmem:[#allocation9] sm:$0x7]
          %v529 = vperm.slane %v527, 0
          %v530 = vperm.slane %v527, 1
          %v531 = vperm.slane %v527, 2
          %v567 = vunpack.c.l.b16 %v495
          %v568 = vunpack.c.h.b16 %v495
          %v569 = vunpack.c.l.b16 %v496
          %v570 = vunpack.c.l.b16 %v497
          %v571 = vunpack.c.h.b16 %v497
          %v572 = vunpack.c.l.b16 %v498
          %v573 = vunpack.c.l.b16 %v499
          %v574 = vunpack.c.h.b16 %v499
          %v575 = vunpack.c.l.b16 %v500
          %v576 = vunpack.c.l.b16 %v501
          %v577 = vunpack.c.h.b16 %v501
          %v578 = vunpack.c.l.b16 %v502
          %v579 = vunpack.c.l.b16 %v503
          %v580 = vunpack.c.h.b16 %v503
          %v581 = vunpack.c.l.b16 %v504
          %v582 = vunpack.c.l.b16 %v505
          %v583 = vunpack.c.h.b16 %v505
          %v584 = vunpack.c.l.b16 %v506
          %v585 = vunpack.c.l.b16 %v507
          %v586 = vunpack.c.h.b16 %v507
          %v587 = vunpack.c.l.b16 %v508
          %v588 = vunpack.c.l.b16 %v509
          %v589 = vunpack.c.h.b16 %v509
          %v590 = vunpack.c.l.b16 %v510
          %v591 = vunpack.c.l.b16 %v511
          %v592 = vunpack.c.h.b16 %v511
          %v593 = vunpack.c.l.b16 %v512
          %v594 = vunpack.c.l.b16 %v513
          %v595 = vunpack.c.h.b16 %v513
          %v596 = vunpack.c.l.b16 %v514
          %v597 = vunpack.c.l.b16 %v515
          %v598 = vunpack.c.h.b16 %v515
          %v599 = vunpack.c.l.b16 %v516
          %v600 = vunpack.c.l.b16 %v517
          %v601 = vunpack.c.h.b16 %v517
          %v602 = vunpack.c.l.b16 %v518
          %v603 = vunpack.c.l.b16 %v519
          %v604 = vunpack.c.h.b16 %v519
          %v605 = vunpack.c.l.b16 %v520
          %v606 = vunpack.c.l.b16 %v521
          %v607 = vunpack.c.h.b16 %v521
          %v608 = vunpack.c.l.b16 %v522
          %v609 = vunpack.c.l.b16 %v523
          %v610 = vunpack.c.h.b16 %v523
          %v611 = vunpack.c.l.b16 %v524
          %v612 = vunpack.c.l.b16 %v525
          %v613 = vunpack.c.h.b16 %v525
          %v614 = vunpack.c.l.b16 %v526
          %v615 = vpack.c.b16 %v570, %v567
          %v616 = vpack.c.b16 %v571, %v568
          %v617 = vpack.c.b16 %v572, %v569
          %v618 = vpack.c.b16 %v576, %v573
          %v619 = vpack.c.b16 %v577, %v574
          %v620 = vpack.c.b16 %v578, %v575
          %v621 = vpack.c.b16 %v582, %v579
          %v622 = vpack.c.b16 %v583, %v580
          %v623 = vpack.c.b16 %v584, %v581
          %v624 = vpack.c.b16 %v588, %v585
          %v625 = vpack.c.b16 %v589, %v586
          %v626 = vpack.c.b16 %v590, %v587
          %v627 = vpack.c.b16 %v594, %v591
          %v628 = vpack.c.b16 %v595, %v592
          %v629 = vpack.c.b16 %v596, %v593
          %v630 = vpack.c.b16 %v600, %v597
          %v631 = vpack.c.b16 %v601, %v598
          %v632 = vpack.c.b16 %v602, %v599
          %v633 = vpack.c.b16 %v606, %v603
          %v634 = vpack.c.b16 %v607, %v604
          %v635 = vpack.c.b16 %v608, %v605
          %v636 = vpack.c.b16 %v612, %v609
          %v637 = vpack.c.b16 %v613, %v610
          %v638 = vpack.c.b16 %v614, %v611
          %663 = vmatpush.bf16.msra.mxu0 %v636
          %664 = vmatpush.bf16.msra.mxu0 %v633
          %665 = vmatpush.bf16.msra.mxu0 %v630
          %666 = vmatpush.bf16.msra.mxu0 %v627
          %667 = vmatpush.bf16.msra.mxu0 %v624
          %668 = vmatpush.bf16.msra.mxu0 %v621
          %669 = vmatpush.bf16.msra.mxu0 %v618
          %670 = vmatpush.bf16.msra.mxu0 %v615
          %671 = vmatmul.bf16.gmra.mxu0 %v494
          %v672 = vpop.f32.mrf.mxu0
          %v673 = vadd.f32 %v529, %v672
          %v674 = vpop.f32.mrf.mxu0
          %675 = vdwg.mxu0
          %676 = vmatpush.bf16.msra.mxu0 %v637
          %677 = vmatpush.bf16.msra.mxu0 %v634
          %678 = vmatpush.bf16.msra.mxu0 %v631
          %679 = vmatpush.bf16.msra.mxu0 %v628
          %680 = vmatpush.bf16.msra.mxu0 %v625
          %681 = vmatpush.bf16.msra.mxu0 %v622
          %682 = vmatpush.bf16.msra.mxu0 %v619
          %683 = vmatpush.bf16.msra.mxu0 %v616
          %684 = vmatmul.bf16.gmra.mxu0 %v494
          %v685 = vpop.f32.mrf.mxu0
          %v686 = vadd.f32 %v530, %v685
          %v687 = vpop.f32.mrf.mxu0
          %688 = vdwg.mxu0
          %689 = vmatpush.bf16.msra.mxu0 %v638
          %690 = vmatpush.bf16.msra.mxu0 %v635
          %691 = vmatpush.bf16.msra.mxu0 %v632
          %692 = vmatpush.bf16.msra.mxu0 %v629
          %693 = vmatpush.bf16.msra.mxu0 %v626
          %694 = vmatpush.bf16.msra.mxu0 %v623
          %695 = vmatpush.bf16.msra.mxu0 %v620
          %696 = vmatpush.bf16.msra.mxu0 %v617
          %697 = vmatmul.bf16.gmra.mxu0 %v494
          %v698 = vpop.f32.mrf.mxu0
          %v699 = vadd.f32 %v531, %v698
          %v700 = vpop.f32.mrf.mxu0
          %701 = vdwg.mxu0
          %v702 = vpack.c.bf16 %v673, %v673
          %v703 = vpack.c.bf16 %v686, %v686
          %v704 = vpack.c.bf16 %v699, %v699
          %705 = vmatpush.bf16.xpose.msra.mxu0 0
          %706 = vmatpush.bf16.xpose.msra.mxu0 0
          %707 = vmatpush.bf16.xpose.msra.mxu0 0
          %708 = vmatpush.bf16.xpose.msra.mxu0 0
          %709 = vmatpush.bf16.xpose.msra.mxu0 0
          %710 = vmatpush.bf16.xpose.msra.mxu0 0
          %711 = vmatpush.bf16.xpose.msra.mxu0 0
          %712 = vmatpush.bf16.xpose.msra.mxu0 %v703
          %713 = vmatmul.bf16.gmra.mxu0 %v702
          %v714 = vpop.f32.mrf.mxu0
          %v715 = vadd.f32 0.0, %v714
          %v716 = vpop.f32.mrf.mxu0
          %717 = vdwg.mxu0
          %v718 = vmul.f32 %v715, 0.088388346
          %vm719 = vcmask 64512
          %v720 = vsel %vm719, %v718, -inf
          %721 = vmax.xlane.f32.xlu0 %v720
          %v722 = vpop.xlane.xlu0 %721
          %v723 = vsub.f32 %v718, %v722
          %v724 = vmul.f32 %v723, 1.442695
          %v725 = vpow.pop %v724
          %v726 = vsel %vm719, %v725, 0.0
          %727 = vadd.xlane.f32.xlu0 %v726
          %v728 = vpop.xlane.xlu0 %727
          %v729 = vrcp.pop %v728
          %v730 = vmul.f32 %v725, %v729
          %v731 = vpack.c.bf16 %v730, %v730
          %v733 = vsel %vm719, %v731, 0
          %vm735 = vcmask 1043456
          %v737 = vsel %vm735, %v704, 0
          %739 = vmatpush.bf16.msra.mxu0 0
          %740 = vmatpush.bf16.msra.mxu0 0
          %741 = vmatpush.bf16.msra.mxu0 0
          %742 = vmatpush.bf16.msra.mxu0 0
          %743 = vmatpush.bf16.msra.mxu0 0
          %744 = vmatpush.bf16.msra.mxu0 0
          %745 = vmatpush.bf16.msra.mxu0 0
          %746 = vmatpush.bf16.msra.mxu0 %v737
          %747 = vmatmul.bf16.gmra.mxu0 %v733
          %v748 = vpop.f32.mrf.mxu0
          %v749 = vadd.f32 0.0, %v748
          %v750 = vpop.f32.mrf.mxu0
          %751 = vdwg.mxu0
          %v752 = vpack.c.bf16 %v749, %v749
          %v753 = vld [vmem:[#allocation10] sm:$0xf]
          %v754 = vld [vmem:[#allocation10 + $0x4] sm:$0xf]
          %v755 = vld [vmem:[#allocation10 + $0x8] sm:$0xf]
          %v756 = vld [vmem:[#allocation10 + $0xc] sm:$0xf]
          %v757 = vld [vmem:[#allocation10 + $0x10] sm:$0xf]
          %v758 = vld [vmem:[#allocation10 + $0x14] sm:$0xf]
          %v759 = vld [vmem:[#allocation10 + $0x18] sm:$0xf]
          %v760 = vld [vmem:[#allocation10 + $0x1c] sm:$0xf]
          %v761 = vld [vmem:[#allocation10 + $0x20] sm:$0xf]
          %v762 = vld [vmem:[#allocation10 + $0x24] sm:$0xf]
          %v763 = vld [vmem:[#allocation10 + $0x28] sm:$0xf]
          %v764 = vld [vmem:[#allocation10 + $0x2c] sm:$0xf]
          %v765 = vld [vmem:[#allocation10 + $0x30] sm:$0xf]
          %v766 = vld [vmem:[#allocation10 + $0x34] sm:$0xf]
          %v767 = vld [vmem:[#allocation10 + $0x38] sm:$0xf]
          %v768 = vld [vmem:[#allocation10 + $0x3c] sm:$0xf]
          %v769 = vld [vmem:[#allocation14] sm:$0x1]
          %v770 = vperm.slane %v769, 0
          %v787 = vunpack.c.l.b16 %v753
          %v788 = vunpack.c.l.b16 %v754
          %v789 = vunpack.c.l.b16 %v755
          %v790 = vunpack.c.l.b16 %v756
          %v791 = vunpack.c.l.b16 %v757
          %v792 = vunpack.c.l.b16 %v758
          %v793 = vunpack.c.l.b16 %v759
          %v794 = vunpack.c.l.b16 %v760
          %v795 = vunpack.c.l.b16 %v761
          %v796 = vunpack.c.l.b16 %v762
          %v797 = vunpack.c.l.b16 %v763
          %v798 = vunpack.c.l.b16 %v764
          %v799 = vunpack.c.l.b16 %v765
          %v800 = vunpack.c.l.b16 %v766
          %v801 = vunpack.c.l.b16 %v767
          %v802 = vunpack.c.l.b16 %v768
          %v803 = vpack.c.b16 %v788, %v787
          %v804 = vpack.c.b16 %v790, %v789
          %v805 = vpack.c.b16 %v792, %v791
          %v806 = vpack.c.b16 %v794, %v793
          %v807 = vpack.c.b16 %v796, %v795
          %v808 = vpack.c.b16 %v798, %v797
          %v809 = vpack.c.b16 %v800, %v799
          %v810 = vpack.c.b16 %v802, %v801
          %819 = vmatpush.bf16.msra.mxu0 %v810
          %820 = vmatpush.bf16.msra.mxu0 %v809
          %821 = vmatpush.bf16.msra.mxu0 %v808
          %822 = vmatpush.bf16.msra.mxu0 %v807
          %823 = vmatpush.bf16.msra.mxu0 %v806
          %824 = vmatpush.bf16.msra.mxu0 %v805
          %825 = vmatpush.bf16.msra.mxu0 %v804
          %826 = vmatpush.bf16.msra.mxu0 %v803
          %827 = vmatmul.bf16.gmra.mxu0 %v752
          %v828 = vpop.f32.mrf.mxu0
          %v829 = vadd.f32 %v770, %v828
          %v830 = vpop.f32.mrf.mxu0
          %831 = vdwg.mxu0
          %v832 = vunpack.c.l.bf16 %v494
          %v833 = vadd.f32 %v832, %v829
          %v834 = vld [vmem:[#allocation14 + $0x2] sm:$0x1]
          %v835 = vld [vmem:[#allocation14 + $0x3] sm:$0x1]
          %836 = vadd.xlane.f32.xlu0 %v833
          %v837 = vpop.xlane.xlu0 %836
          %v838 = vrcp.pop 128.0
          %v839 = vmul.f32 128.0, %v838
          %v840 = vsub.f32 1.0, %v839
          %v841 = vmul.f32 %v838, %v840
          %v842 = vadd.f32 %v838, %v841
          %vm843 = vweird.f32 %v838
          %v844 = vsel %vm843, %v838, %v842
          %v845 = vmul.f32 %v837, %v844
          %v846 = vsub.f32 %v833, %v845
          %v847 = vmul.f32 %v846, %v846
          %848 = vadd.xlane.f32.xlu0 %v847
          %v849 = vpop.xlane.xlu0 %848
          %v850 = vmul.f32 %v849, %v844
          %v851 = vadd.f32 %v850, 1e-05
          %v852 = vrsqrt.pop %v851
          %v853 = vmul.f32 %v852, %v851
          %v854 = vmul.f32 %v853, %v852
          %v855 = vmul.f32 0.5, %v854
          %v856 = vsub.f32 1.5, %v855
          %v857 = vmul.f32 %v852, %v856
          %vm858 = vweird.f32 %v851
          %vm859 = vweird.f32 %v852
          %vm860 = vmor %vm858, %vm859
          %v861 = vsel %vm860, %v852, %v857
          %v862 = vmul.f32 %v846, %v861
          %v863 = vperm.slane %v834, 0
          %v864 = vmul.f32 %v862, %v863
          %v865 = vperm.slane %v835, 0
          %v866 = vadd.f32 %v864, %v865
          %867 = vst [vmem:[#allocation2] sm:$0xff] %v866
          %868 = vst [vmem:[#allocation3] sm:$0xff] 0.0
        $region84: #{tpu_custom_call.1} parent=51 // pred_fallthru
          _
        %v869 = vld [vmem:[#allocation2] sm:$0xff]
        %v870 = vpack.c.bf16 %v869, %v869
        %v871 = vld [vmem:[%s423] sm:$0xf]
        %v872 = vld [vmem:[%s423 + $0x4] sm:$0xf]
        %v873 = vld [vmem:[%s423 + $0x8] sm:$0xf]
        %v874 = vld [vmem:[%s423 + $0xc] sm:$0xf]
        %v875 = vld [vmem:[%s423 + $0x10] sm:$0xf]
        %v876 = vld [vmem:[%s423 + $0x14] sm:$0xf]
        %v877 = vld [vmem:[%s423 + $0x18] sm:$0xf]
        %v878 = vld [vmem:[%s423 + $0x1c] sm:$0xf]
        %v879 = vld [vmem:[%s423 + $0x20] sm:$0xf]
        %v880 = vld [vmem:[%s423 + $0x24] sm:$0xf]
        %v881 = vld [vmem:[%s423 + $0x28] sm:$0xf]
        %v882 = vld [vmem:[%s423 + $0x2c] sm:$0xf]
        %v883 = vld [vmem:[%s423 + $0x30] sm:$0xf]
        %v884 = vld [vmem:[%s423 + $0x34] sm:$0xf]
        %v885 = vld [vmem:[%s423 + $0x38] sm:$0xf]
        %v886 = vld [vmem:[%s423 + $0x3c] sm:$0xf]
        %v887 = vld [vmem:[%s487] sm:$0x1]
        %v889 = vperm.slane %v887, 0
        %v907 = vunpack.c.l.b16 %v871
        %v908 = vunpack.c.l.b16 %v872
        %v909 = vunpack.c.l.b16 %v873
        %v910 = vunpack.c.l.b16 %v874
        %v911 = vunpack.c.l.b16 %v875
        %v912 = vunpack.c.l.b16 %v876
        %v913 = vunpack.c.l.b16 %v877
        %v914 = vunpack.c.l.b16 %v878
        %v915 = vunpack.c.l.b16 %v879
        %v916 = vunpack.c.l.b16 %v880
        %v917 = vunpack.c.l.b16 %v881
        %v918 = vunpack.c.l.b16 %v882
        %v919 = vunpack.c.l.b16 %v883
        %v920 = vunpack.c.l.b16 %v884
        %v921 = vunpack.c.l.b16 %v885
        %v922 = vunpack.c.l.b16 %v886
        %v923 = vpack.c.b16 %v908, %v907
        %v924 = vpack.c.b16 %v910, %v909
        %v925 = vpack.c.b16 %v912, %v911
        %v926 = vpack.c.b16 %v914, %v913
        %v927 = vpack.c.b16 %v916, %v915
        %v928 = vpack.c.b16 %v918, %v917
        %v929 = vpack.c.b16 %v920, %v919
        %v930 = vpack.c.b16 %v922, %v921
        %939 = vmatpush.bf16.msra.mxu0 %v930
        %940 = vmatpush.bf16.msra.mxu0 %v929
        %941 = vmatpush.bf16.msra.mxu0 %v928
        %942 = vmatpush.bf16.msra.mxu0 %v927
        %943 = vmatpush.bf16.msra.mxu0 %v926
        %944 = vmatpush.bf16.msra.mxu0 %v925
        %945 = vmatpush.bf16.msra.mxu0 %v924
        %946 = vmatpush.bf16.msra.mxu0 %v923
        %947 = vmatmul.bf16.gmra.mxu0 %v870
        %v948 = vpop.f32.mrf.mxu0
        %v949 = vadd.f32 %v889, %v948
        %v950 = vpop.f32.mrf.mxu0
        %951 = vdwg.mxu0
        %v952 = vmul.f32 %v949, %v949
        %v953 = vmul.f32 %v949, %v952
        %v954 = vmul.f32 %v953, 0.044715
        %v955 = vadd.f32 %v949, %v954
        %v956 = vmul.f32 %v955, 0.7978846
        %v957 = vtanh.pop %v956
        %v958 = vadd.f32 %v957, 1.0
        %v959 = vmul.f32 %v958, 0.5
        %v960 = vmul.f32 %v949, %v959
        %v961 = vld [vmem:[#allocation3] sm:$0xff]
        %v962 = vpack.c.bf16 %v960, %v960
        %v963 = vld [vmem:[%s433] sm:$0xf]
        %v964 = vld [vmem:[%s433 + $0x4] sm:$0xf]
        %v965 = vld [vmem:[%s433 + $0x8] sm:$0xf]
        %v966 = vld [vmem:[%s433 + $0xc] sm:$0xf]
        %v967 = vld [vmem:[%s433 + $0x10] sm:$0xf]
        %v968 = vld [vmem:[%s433 + $0x14] sm:$0xf]
        %v969 = vld [vmem:[%s433 + $0x18] sm:$0xf]
        %v970 = vld [vmem:[%s433 + $0x1c] sm:$0xf]
        %v971 = vld [vmem:[%s433 + $0x20] sm:$0xf]
        %v972 = vld [vmem:[%s433 + $0x24] sm:$0xf]
        %v973 = vld [vmem:[%s433 + $0x28] sm:$0xf]
        %v974 = vld [vmem:[%s433 + $0x2c] sm:$0xf]
        %v975 = vld [vmem:[%s433 + $0x30] sm:$0xf]
        %v976 = vld [vmem:[%s433 + $0x34] sm:$0xf]
        %v977 = vld [vmem:[%s433 + $0x38] sm:$0xf]
        %v978 = vld [vmem:[%s433 + $0x3c] sm:$0xf]
        %v995 = vunpack.c.l.b16 %v963
        %v996 = vunpack.c.l.b16 %v964
        %v997 = vunpack.c.l.b16 %v965
        %v998 = vunpack.c.l.b16 %v966
        %v999 = vunpack.c.l.b16 %v967
        %v1000 = vunpack.c.l.b16 %v968
        %v1001 = vunpack.c.l.b16 %v969
        %v1002 = vunpack.c.l.b16 %v970
        %v1003 = vunpack.c.l.b16 %v971
        %v1004 = vunpack.c.l.b16 %v972
        %v1005 = vunpack.c.l.b16 %v973
        %v1006 = vunpack.c.l.b16 %v974
        %v1007 = vunpack.c.l.b16 %v975
        %v1008 = vunpack.c.l.b16 %v976
        %v1009 = vunpack.c.l.b16 %v977
        %v1010 = vunpack.c.l.b16 %v978
        %v1011 = vpack.c.b16 %v996, %v995
        %v1012 = vpack.c.b16 %v998, %v997
        %v1013 = vpack.c.b16 %v1000, %v999
        %v1014 = vpack.c.b16 %v1002, %v1001
        %v1015 = vpack.c.b16 %v1004, %v1003
        %v1016 = vpack.c.b16 %v1006, %v1005
        %v1017 = vpack.c.b16 %v1008, %v1007
        %v1018 = vpack.c.b16 %v1010, %v1009
        %1027 = vmatpush.bf16.msra.mxu0 %v1018
        %1028 = vmatpush.bf16.msra.mxu0 %v1017
        %1029 = vmatpush.bf16.msra.mxu0 %v1016
        %1030 = vmatpush.bf16.msra.mxu0 %v1015
        %1031 = vmatpush.bf16.msra.mxu0 %v1014
        %1032 = vmatpush.bf16.msra.mxu0 %v1013
        %1033 = vmatpush.bf16.msra.mxu0 %v1012
        %1034 = vmatpush.bf16.msra.mxu0 %v1011
        %1035 = vmatmul.bf16.gmra.mxu0 %v962
        %v1036 = vpop.f32.mrf.mxu0
        %v1037 = vadd.f32 0.0, %v1036
        %v1038 = vpop.f32.mrf.mxu0
        %1039 = vdwg.mxu0
        %v1040 = vadd.f32 %v961, %v1037
        %1041 = vst [vmem:[#allocation3] sm:$0xff] %v1040
        %p1042 = scmp.eq.s32.totalorder %s32, 1
        // Predicated region
        $region85: #{tpu_custom_call.1} parent=51 // pred_check
          %p1043 = pneg %p1042
        $region86: #{tpu_custom_call.1} parent=51 // pred_check_branch
          %1045 = sbr.rel (%p1043) target = $region88
        $region87: #{tpu_custom_call.1} parent=51 // pred_region
          %v1046 = vld [vmem:[#allocation2] sm:$0xff]
          %v1047 = vld [vmem:[#allocation3] sm:$0xff]
          %v1048 = vadd.f32 %v1046, %v1047
          %v1049 = vld [vmem:[#allocation14 + $0x1] sm:$0x1]
          %v1050 = vperm.slane %v1049, 0
          %v1051 = vadd.f32 %v1048, %v1050
          %v1052 = vld [vmem:[#allocation14 + $0x4] sm:$0x1]
          %v1053 = vld [vmem:[#allocation14 + $0x5] sm:$0x1]
          %1054 = vadd.xlane.f32.xlu0 %v1051
          %v1055 = vpop.xlane.xlu0 %1054
          %v1056 = vrcp.pop 128.0
          %v1057 = vmul.f32 128.0, %v1056
          %v1058 = vsub.f32 1.0, %v1057
          %v1059 = vmul.f32 %v1056, %v1058
          %v1060 = vadd.f32 %v1056, %v1059
          %vm1061 = vweird.f32 %v1056
          %v1062 = vsel %vm1061, %v1056, %v1060
          %v1063 = vmul.f32 %v1055, %v1062
          %v1064 = vsub.f32 %v1051, %v1063
          %v1065 = vmul.f32 %v1064, %v1064
          %1066 = vadd.xlane.f32.xlu0 %v1065
          %v1067 = vpop.xlane.xlu0 %1066
          %v1068 = vmul.f32 %v1067, %v1062
          %v1069 = vadd.f32 %v1068, 1e-05
          %v1070 = vrsqrt.pop %v1069
          %v1071 = vmul.f32 %v1070, %v1069
          %v1072 = vmul.f32 %v1071, %v1070
          %v1073 = vmul.f32 0.5, %v1072
          %v1074 = vsub.f32 1.5, %v1073
          %v1075 = vmul.f32 %v1070, %v1074
          %vm1076 = vweird.f32 %v1069
          %vm1077 = vweird.f32 %v1070
          %vm1078 = vmor %vm1076, %vm1077
          %v1079 = vsel %vm1078, %v1070, %v1075
          %v1080 = vmul.f32 %v1064, %v1079
          %v1081 = vperm.slane %v1052, 0
          %v1082 = vmul.f32 %v1080, %v1081
          %v1083 = vperm.slane %v1053, 0
          %v1084 = vadd.f32 %v1082, %v1083
          %v1085 = vpack.c.bf16 %v1084, %v1084
          %1086 = vst [vmem:[%s484] sm:$0xf] %v1085
        $region88: #{tpu_custom_call.1} parent=51 // pred_fallthru
          _
        %s1087 = sand.u32 %s235, 1
        %s1088 = scalar_lea.sflag [#allocation6], %s1087
        %s1089 = sand.u32 %s235, 1
        %s1090 = smul.addr %s1089, 4
        %s1091 = scalar_lea.vmem [#allocation15], %s1090
        // Predicated region
        $region89: #{tpu_custom_call.1} parent=51 // pred_check
          %p1092 = pneg %p245
        $region90: #{tpu_custom_call.1} parent=51 // pred_check_branch
          %1094 = sbr.rel (%p1092) target = $region92
        $region91: #{tpu_custom_call.1} parent=51 // pred_region
          %1096 = vsyncadd %s1088, 0
          %s1097 = smul.addr %s31, 4
          %s1098 = scalar_lea.hbm %s8, %s1097
          %s1100 = sshll.u32 %s1091, 4
          %s1101 = int_to_ptr.vmem [resolvable:$true] %s1100
          %s1102 = sshll.u32 %s1098, 4
          %s1103 = int_to_ptr.hbm [resolvable:$true] %s1102
          %1105 = dma.vmem_to_hbm [thread:$0]  %s1101, 64, %s1103, %s1088
        $region92: #{tpu_custom_call.1} parent=51 // pred_fallthru
          _
      $region52: #{tpu_custom_call.1} parent=5 // pred_fallthru
        _
      %p1106 = scmp.le.s32.totalorder 2, %s22
      // Predicated region
      $region93: #{tpu_custom_call.1} parent=5 // pred_check
        %p1107 = pneg %p1106
      $region94: #{tpu_custom_call.1} parent=5 // pred_check_branch
        %1109 = sbr.rel (%p1107) target = $region96
      $region95: #{tpu_custom_call.1} parent=5 // pred_region
        %s1110 = ssub.s32 %s22, 2
        // Predicated region
        $region97: #{tpu_custom_call.1} parent=95 // pred_check
          %p1111 = pneg %p251
        $region98: #{tpu_custom_call.1} parent=95 // pred_check_branch
          %1113 = sbr.rel (%p1111) target = $region100
        $region99: #{tpu_custom_call.1} parent=95 // pred_region
          %s1114 = sand.u32 %s236, 1
          %s1115 = scalar_lea.sflag [#allocation6], %s1114
          %s1116 = sand.u32 %s236, 1
          %s1117 = smul.addr %s1116, 4
          %s1118 = scalar_lea.vmem [#allocation15], %s1117
          %1120 = dma.done %s1115, 64
        $region100: #{tpu_custom_call.1} parent=95 // pred_fallthru
          _
      $region96: #{tpu_custom_call.1} parent=5 // pred_fallthru
        _
    $region6: #{tpu_custom_call.1} parent=1 // loop_footer
      %s26 = sadd.s32 1, %s22
    $region7: #{tpu_custom_call.1} parent=1 // loop_footer_branch
      %21 = sbr.rel target = $region3
    $region8: #{tpu_custom_call.1} parent=1 // loop_exit
      _
    %1121 = vsyncpa [#allocation5], 1
    %s1122 = scalar_lea.sflag [#allocation5], 1
    %1123 = vsyncpa %s1122, 1
    %1124 = vsyncpa [#allocation8], 1
    %1125 = vsyncpa [#allocation11], 1
    %1126 = vsyncpa [#allocation6], 1
    %s1127 = scalar_lea.sflag [#allocation6], 1
    %1128 = vsyncpa %s1127, 1

</llo_original>
